<compile_context>
chip_gen: v5e
topology: v5e:2x2
jax: 0.10.0
libtpu: 0.0.40
codegen_flags: <defaults>
</compile_context>

<pallas_src>
import jax
import jax.numpy as jnp
import numpy as np
from jax import lax
from jax.experimental import pallas as pl
from jax.experimental.pallas import tpu as pltpu

D_IN = 300          # GRU input size
H = 64              # GRU hidden size (per direction)
FC1_OUT = 32


# ---------------------------------------------------------------- kernel ----
def _make_kernel(T, TB):
    """Kernel closure over static T (seq len) and TB (padded batch tile)."""
    G = 6 * H

    def kernel(x_ref, wih_ref, bgi_ref, whh_ref, bhn_ref,
               w1a_ref, w1b_ref, b1_ref, w2_ref, b2_ref, out_ref):
        f32 = jnp.float32
        bf16 = jnp.bfloat16

        # ---- hoisted input projection: one dense bf16 GEMM -------------------
        # x_ref: (T*TB, 300) bf16, time-major within the batch tile.
        # Packed gate columns: [r_f, r_b, z_f, z_b, n_f, n_b]; both directions'
        # columns are projections of forward-time x (time reversal of the
        # backward direction is handled by row selection in the loop).
        gi_all = (jnp.dot(x_ref[...], wih_ref[...], preferred_element_type=f32)
                  + bgi_ref[...])                               # (T*TB, 384) f32

        whh = whh_ref[...]                                      # (128, 384) bf16
        bhn_b = jnp.broadcast_to(bhn_ref[...], (TB, 2 * H))     # hoisted broadcast

        # Column mask: True on forward-direction gate columns (0:64, 128:192, 256:320).
        col = lax.broadcasted_iota(jnp.int32, (TB, G), 1)
        fwd_cols = (col % (2 * H)) < H

        h = jnp.zeros((TB, 2 * H), f32)                         # packed [h_fwd | h_bwd]
        h_first = h

        # ---- fused bidirectional recurrence, fully unrolled -------------------
        for s in range(T):
            gi_f = gi_all[s * TB:(s + 1) * TB, :]               # fwd dir sees x[s]
            gi_b = gi_all[(T - 1 - s) * TB:(T - s) * TB, :]     # bwd dir sees x[T-1-s]
            gi = jnp.where(fwd_cols, gi_f, gi_b)                # (TB, 384)
            gh = jnp.dot(h.astype(bf16), whh, preferred_element_type=f32)
            rz = jax.nn.sigmoid(gi[:, :4 * H] + gh[:, :4 * H])  # r|z, 256 lanes
            r = rz[:, :2 * H]                                   # [r_f | r_b]
            z = rz[:, 2 * H:]                                   # [z_f | z_b]
            n = jnp.tanh(gi[:, 4 * H:] + r * (gh[:, 4 * H:] + bhn_b))
            h = n + z * (h - n)
            if s == 0:
                h_first = h                 # [h_fwd(t=0)   | h_bwd(t=T-1)]
        h_last = h                          # [h_fwd(t=T-1) | h_bwd(t=0)]

        # ---- fc1 as two 128-aligned dots (no cross-lane concat) ---------------
        y = (jnp.dot(h_first, w1a_ref[...], preferred_element_type=f32)
             + jnp.dot(h_last, w1b_ref[...], preferred_element_type=f32)
             + b1_ref[...])
        y = jnp.where(y >= 0.0, y, 0.01 * y)                    # LeakyReLU(0.01)
        y = jnp.dot(y, w2_ref[...], preferred_element_type=f32) + b2_ref[...]
        out_ref[...] = y

    return kernel


def model_forward(x, kparams):
    """x: (B, T, 300) float32  ->  (B, 1) float32."""
    B, T, _ = x.shape
    B8 = (B + 7) // 8 * 8                 # pad batch to sublane multiple
    TB = min(128, B8)                     # batch tile sized toward MXU M dim
    n_tiles = (B8 + TB - 1) // TB
    Bp = n_tiles * TB

    x_tm = jnp.transpose(x, (1, 0, 2))    # (T, B, 300) time-major
    if Bp != B:
        x_tm = jnp.pad(x_tm, ((0, 0), (0, Bp - B), (0, 0)))
    # (n_tiles, T*TB, 300): each batch tile is a contiguous, time-major slab.
    x_tiles = (x_tm.reshape(T, n_tiles, TB, D_IN)
               .transpose(1, 0, 2, 3)
               .reshape(n_tiles, T * TB, D_IN)
               .astype(jnp.bfloat16))

    weight_specs = [pl.BlockSpec(p.shape, lambda i: (0, 0)) for p in kparams]
    # TODO(synk): for very large T*TB, stream x / gi over an additional T grid
    # axis (or manual double-buffered DMA) instead of whole-sequence VMEM
    # residency (v7x has only 64 MiB physical VMEM).
    out = pl.pallas_call(
        _make_kernel(T, TB),
        out_shape=jax.ShapeDtypeStruct((Bp, 1), jnp.float32),
        grid=(n_tiles,),
        in_specs=[pl.BlockSpec((None, T * TB, D_IN), lambda i: (i, 0, 0))]
                 + weight_specs,
        out_specs=pl.BlockSpec((TB, 1), lambda i: (i, 0)),
        compiler_params=pltpu.CompilerParams(
            dimension_semantics=("parallel",)),
    )(x_tiles, *kparams)
    return out[:B]


# ------------------------------------------------- parameter construction ----
def pack_params(raw):
    """Repack PyTorch-layout GRU/Linear weights into the kernel's fused layout.
    Packed gate columns: [r_f, r_b, z_f, z_b, n_f, n_b] (each gate pair 128-wide)."""
    np_ = lambda a: np.asarray(a, np.float32)
    wih_f, whh_f = np_(raw["wih_f"]), np_(raw["whh_f"])
    wih_b, whh_b = np_(raw["wih_b"]), np_(raw["whh_b"])
    bih_f, bhh_f = np_(raw["bih_f"]), np_(raw["bhh_f"])
    bih_b, bhh_b = np_(raw["bih_b"]), np_(raw["bhh_b"])

    G = 6 * H
    col = {"r_f": 0, "r_b": H, "z_f": 2 * H, "z_b": 3 * H, "n_f": 4 * H, "n_b": 5 * H}

    # input -> hidden: one DENSE (300, 384) matrix, both directions' columns act
    # on forward-time x (backward time reversal handled in-kernel by row select).
    wih_all = np.zeros((D_IN, G), np.float32)
    for g, name in enumerate(("r", "z", "n")):
        wih_all[:, col[name + "_f"]:col[name + "_f"] + H] = wih_f[g * H:(g + 1) * H].T
        wih_all[:, col[name + "_b"]:col[name + "_b"] + H] = wih_b[g * H:(g + 1) * H].T

    # hidden -> hidden: block structured for packed h = [h_f | h_b]
    whh_p = np.zeros((2 * H, G), np.float32)
    for g, name in enumerate(("r", "z", "n")):
        whh_p[:H, col[name + "_f"]:col[name + "_f"] + H] = whh_f[g * H:(g + 1) * H].T
        whh_p[H:, col[name + "_b"]:col[name + "_b"] + H] = whh_b[g * H:(g + 1) * H].T

    # fused gi bias: b_ih for all gates, plus b_hh folded in for r and z only
    bgi = np.zeros((1, G), np.float32)
    for g, name in enumerate(("r", "z", "n")):
        bf = bih_f[g * H:(g + 1) * H].copy()
        bb = bih_b[g * H:(g + 1) * H].copy()
        if name != "n":
            bf = bf + bhh_f[g * H:(g + 1) * H]
            bb = bb + bhh_b[g * H:(g + 1) * H]
        bgi[0, col[name + "_f"]:col[name + "_f"] + H] = bf
        bgi[0, col[name + "_b"]:col[name + "_b"] + H] = bb

    bhn = np.concatenate([bhh_f[2 * H:], bhh_b[2 * H:]])[None, :]        # (1, 128)

    # fc1 split into two 128-row blocks matching the packed GRU states:
    #   feat = [fwd_t0 | bwd_t0 | fwd_tlast | bwd_tlast]
    #   h_first = [fwd_t0 | bwd_tlast], h_last = [fwd_tlast | bwd_t0]
    w1_t = np_(raw["w1"]).T                                              # (256, 32)
    w1a = np.concatenate([w1_t[0:H], w1_t[3 * H:4 * H]], axis=0)         # (128, 32)
    w1b = np.concatenate([w1_t[2 * H:3 * H], w1_t[H:2 * H]], axis=0)     # (128, 32)
    b1 = np_(raw["b1"])[None, :]
    w2 = np_(raw["w2"]).T                                                # (32, 1)
    b2 = np_(raw["b2"])[None, :]

    # bf16 storage for the big MXU operands; everything else stays f32.
    return (jnp.asarray(wih_all, jnp.bfloat16),
            jnp.asarray(bgi, jnp.float32),
            jnp.asarray(whh_p, jnp.bfloat16),
            jnp.asarray(bhn, jnp.float32),
            jnp.asarray(w1a, jnp.float32),
            jnp.asarray(w1b, jnp.float32),
            jnp.asarray(b1, jnp.float32),
            jnp.asarray(w2, jnp.float32),
            jnp.asarray(b2, jnp.float32))


def init_params(key):
    k_gru = 1.0 / np.sqrt(H)       # PyTorch GRU init range
    k_fc1 = 1.0 / np.sqrt(256.0)   # PyTorch Linear init range
    k_fc2 = 1.0 / np.sqrt(32.0)
    ks = jax.random.split(key, 12)
    u = lambda k, shape, lim: jax.random.uniform(k, shape, jnp.float32, -lim, lim)

    raw = dict(
        wih_f=u(ks[0], (3 * H, D_IN), k_gru), whh_f=u(ks[1], (3 * H, H), k_gru),
        bih_f=u(ks[2], (3 * H,), k_gru),      bhh_f=u(ks[3], (3 * H,), k_gru),
        wih_b=u(ks[4], (3 * H, D_IN), k_gru), whh_b=u(ks[5], (3 * H, H), k_gru),
        bih_b=u(ks[6], (3 * H,), k_gru),      bhh_b=u(ks[7], (3 * H,), k_gru),
        w1=u(ks[8], (FC1_OUT, 4 * H), k_fc1), b1=u(ks[9], (FC1_OUT,), k_fc1),
        w2=u(ks[10], (1, FC1_OUT), k_fc2),    b2=u(ks[11], (1,), k_fc2),
    )
    return raw, pack_params(raw)


# ----------------- pure-JAX reference (mirrors PyTorch semantics, raw weights) ----
def reference_forward(x, raw):
    B, T, _ = x.shape

    def run_dir(xs, wih, whh, bih, bhh):
        def cell(h, x_t):
            gi = x_t @ wih.T + bih
            gh = h @ whh.T + bhh
            i_r, i_z, i_n = gi[:, :H], gi[:, H:2 * H], gi[:, 2 * H:]
            h_r, h_z, h_n = gh[:, :H], gh[:, H:2 * H], gh[:, 2 * H:]
            r = jax.nn.sigmoid(i_r + h_r)
            z = jax.nn.sigmoid(i_z + h_z)
            n = jnp.tanh(i_n + r * h_n)
            h_new = (1.0 - z) * n + z * h
            return h_new, h_new
        h0 = jnp.zeros((B, H), jnp.float32)
        _, hs = lax.scan(cell, h0, xs)
        return hs                                              # (T, B, H)

    xs = jnp.transpose(x, (1, 0, 2))                           # (T, B, D)
    hs_f = run_dir(xs, raw["wih_f"], raw["whh_f"], raw["bih_f"], raw["bhh_f"])
    hs_b = run_dir(xs[::-1], raw["wih_b"], raw["whh_b"], raw["bih_b"], raw["bhh_b"])[::-1]
    out = jnp.concatenate([hs_f, hs_b], axis=-1)               # (T, B, 2H)
    x_first, x_last = out[0], out[-1]                          # (B, 2H) each
    feat = jnp.concatenate([x_first, x_last], axis=1)          # (B, 4H)
    y = feat @ raw["w1"].T + raw["b1"]
    y = jnp.where(y >= 0.0, y, 0.01 * y)
    y = y @ raw["w2"].T + raw["b2"]
    return y


if __name__ == "__main__":
    key = jax.random.PRNGKey(0)
    kx, kp = jax.random.split(key)

    B, T = 2, 8
    x = jax.random.normal(kx, (B, T, D_IN), jnp.float32)
    raw, kparams = init_params(kp)

    out = jax.block_until_ready(model_forward(x, kparams))
    ref = jax.block_until_ready(reference_forward(x, raw))

    # bf16 MXU-operand storage -> slightly looser tolerance vs the f32 reference.
    np.testing.assert_allclose(np.asarray(out), np.asarray(ref), atol=5e-3, rtol=5e-3)
    assert out.shape == (B, 1) and out.dtype == jnp.float32

    print("KERNEL_OK")
</pallas_src>

<mosaic_0001>
module attributes {stable_mosaic.version = 11 : i64} {
  func.func @kernel(%arg0: i32, %arg1: memref<1x64x300xbf16, #tpu.memory_space<vmem>>, %arg2: memref<300x384xbf16, #tpu.memory_space<vmem>>, %arg3: memref<1x384xf32, #tpu.memory_space<vmem>>, %arg4: memref<128x384xbf16, #tpu.memory_space<vmem>>, %arg5: memref<1x128xf32, #tpu.memory_space<vmem>>, %arg6: memref<128x32xf32, #tpu.memory_space<vmem>>, %arg7: memref<128x32xf32, #tpu.memory_space<vmem>>, %arg8: memref<1x32xf32, #tpu.memory_space<vmem>>, %arg9: memref<32x1xf32, #tpu.memory_space<vmem>>, %arg10: memref<1x1xf32, #tpu.memory_space<vmem>>, %arg11: memref<8x1xf32, #tpu.memory_space<vmem>>) attributes {dimension_semantics = [#tpu.dimension_semantics<parallel>], iteration_bounds = array<i64: 1>, scalar_prefetch = 0 : i64, scratch_operands = 0 : i64, tpu.core_type = #tpu.core_type<tc>, window_params = [{transform_indices = @transform_0, window_bounds = array<i64: 1, 64, 300>}, {pipeline_mode = #tpu.pipeline_mode<synchronous>, transform_indices = @transform_1, window_bounds = array<i64: 300, 384>}, {pipeline_mode = #tpu.pipeline_mode<synchronous>, transform_indices = @transform_2, window_bounds = array<i64: 1, 384>}, {pipeline_mode = #tpu.pipeline_mode<synchronous>, transform_indices = @transform_3, window_bounds = array<i64: 128, 384>}, {pipeline_mode = #tpu.pipeline_mode<synchronous>, transform_indices = @transform_4, window_bounds = array<i64: 1, 128>}, {pipeline_mode = #tpu.pipeline_mode<synchronous>, transform_indices = @transform_5, window_bounds = array<i64: 128, 32>}, {pipeline_mode = #tpu.pipeline_mode<synchronous>, transform_indices = @transform_6, window_bounds = array<i64: 128, 32>}, {pipeline_mode = #tpu.pipeline_mode<synchronous>, transform_indices = @transform_7, window_bounds = array<i64: 1, 32>}, {pipeline_mode = #tpu.pipeline_mode<synchronous>, transform_indices = @transform_8, window_bounds = array<i64: 32, 1>}, {pipeline_mode = #tpu.pipeline_mode<synchronous>, transform_indices = @transform_9, window_bounds = array<i64: 1, 1>}, {transform_indices = @transform_10, window_bounds = array<i64: 8, 1>}]} {
    %c0 = arith.constant 0 : index
    %c0_0 = arith.constant 0 : index
    %c0_1 = arith.constant 0 : index
    %0 = vector.load %arg1[%c0, %c0_0, %c0_1] : memref<1x64x300xbf16, #tpu.memory_space<vmem>>, vector<1x64x300xbf16>
    %1 = vector.shape_cast %0 : vector<1x64x300xbf16> to vector<64x300xbf16>
    %c0_2 = arith.constant 0 : index
    %c0_3 = arith.constant 0 : index
    %2 = vector.load %arg2[%c0_2, %c0_3] : memref<300x384xbf16, #tpu.memory_space<vmem>>, vector<300x384xbf16>
    %cst = arith.constant dense<0.000000e+00> : vector<64x384xf32>
    %3 = tpu.matmul %1, %2, %cst {dimension_numbers = #tpu.dot_dimension_numbers<[1], [0], [0], [1], [0, 0, 1, 1], [], []>} : vector<64x300xbf16>, vector<300x384xbf16>, vector<64x384xf32> -> vector<64x384xf32>
    %c0_4 = arith.constant 0 : index
    %c0_5 = arith.constant 0 : index
    %4 = vector.load %arg3[%c0_4, %c0_5] : memref<1x384xf32, #tpu.memory_space<vmem>>, vector<1x384xf32>
    %5 = vector.broadcast %4 : vector<1x384xf32> to vector<64x384xf32>
    %6 = arith.addf %3, %5 : vector<64x384xf32>
    %c0_6 = arith.constant 0 : index
    %c0_7 = arith.constant 0 : index
    %7 = vector.load %arg4[%c0_6, %c0_7] : memref<128x384xbf16, #tpu.memory_space<vmem>>, vector<128x384xbf16>
    %c0_8 = arith.constant 0 : index
    %c0_9 = arith.constant 0 : index
    %8 = vector.load %arg5[%c0_8, %c0_9] : memref<1x128xf32, #tpu.memory_space<vmem>>, vector<1x128xf32>
    %9 = vector.shape_cast %8 : vector<1x128xf32> to vector<1x128xf32>
    %10 = vector.broadcast %9 : vector<1x128xf32> to vector<8x128xf32>
    %11 = tpu.iota {dimensions = array<i32: 1>} : vector<8x384xi32>
    %c128_i32 = arith.constant 128 : i32
    %c0_i32 = arith.constant 0 : i32
    %12 = arith.cmpi eq, %c128_i32, %c0_i32 : i32
    %c1_i32 = arith.constant 1 : i32
    %13 = arith.select %12, %c1_i32, %c128_i32 : i32
    %14 = vector.broadcast %13 : i32 to vector<8x384xi32>
    %15 = arith.remsi %11, %14 : vector<8x384xi32>
    %c0_i32_10 = arith.constant 0 : i32
    %16 = vector.broadcast %c0_i32_10 : i32 to vector<8x384xi32>
    %17 = arith.cmpi ne, %15, %16 : vector<8x384xi32>
    %c0_i32_11 = arith.constant 0 : i32
    %18 = vector.broadcast %c0_i32_11 : i32 to vector<8x384xi32>
    %19 = arith.cmpi slt, %15, %18 : vector<8x384xi32>
    %c0_i32_12 = arith.constant 0 : i32
    %20 = arith.cmpi slt, %13, %c0_i32_12 : i32
    %21 = vector.broadcast %20 : i1 to vector<8x384xi1>
    %22 = vector.broadcast %21 : vector<8x384xi1> to vector<8x384xi1>
    %23 = arith.xori %19, %22 : vector<8x384xi1>
    %24 = arith.andi %23, %17 : vector<8x384xi1>
    %25 = vector.broadcast %13 : i32 to vector<8x384xi32>
    %26 = arith.addi %15, %25 : vector<8x384xi32>
    %27 = arith.select %24, %26, %15 : vector<8x384xi1>, vector<8x384xi32>
    %c64_i32 = arith.constant 64 : i32
    %28 = vector.broadcast %c64_i32 : i32 to vector<8x384xi32>
    %29 = arith.cmpi slt, %27, %28 : vector<8x384xi32>
    %cst_13 = arith.constant 0.000000e+00 : f32
    %30 = vector.broadcast %cst_13 : f32 to vector<8x128xf32>
    %31 = vector.extract_strided_slice %6 {offsets = [0, 0], sizes = [8, 384], strides = [1, 1]} : vector<64x384xf32> to vector<8x384xf32>
    %32 = vector.extract_strided_slice %6 {offsets = [56, 0], sizes = [8, 384], strides = [1, 1]} : vector<64x384xf32> to vector<8x384xf32>
    %33 = arith.select %29, %31, %32 : vector<8x384xi1>, vector<8x384xf32>
    %34 = arith.truncf %30 : vector<8x128xf32> to vector<8x128xbf16>
    %cst_14 = arith.constant dense<0.000000e+00> : vector<8x384xf32>
    %35 = tpu.matmul %34, %7, %cst_14 {dimension_numbers = #tpu.dot_dimension_numbers<[1], [0], [0], [1], [0, 0, 1, 1], [], []>} : vector<8x128xbf16>, vector<128x384xbf16>, vector<8x384xf32> -> vector<8x384xf32>
    %36 = vector.extract_strided_slice %33 {offsets = [0, 0], sizes = [8, 256], strides = [1, 1]} : vector<8x384xf32> to vector<8x256xf32>
    %37 = vector.extract_strided_slice %35 {offsets = [0, 0], sizes = [8, 256], strides = [1, 1]} : vector<8x384xf32> to vector<8x256xf32>
    %38 = arith.addf %36, %37 : vector<8x256xf32>
    %39 = arith.negf %38 : vector<8x256xf32>
    %40 = math.exp %39 : vector<8x256xf32>
    %cst_15 = arith.constant 1.000000e+00 : f32
    %41 = vector.broadcast %cst_15 : f32 to vector<8x256xf32>
    %42 = arith.addf %41, %40 : vector<8x256xf32>
    %43 = arith.divf %41, %42 : vector<8x256xf32>
    %44 = vector.extract_strided_slice %43 {offsets = [0, 0], sizes = [8, 128], strides = [1, 1]} : vector<8x256xf32> to vector<8x128xf32>
    %45 = vector.extract_strided_slice %43 {offsets = [0, 128], sizes = [8, 128], strides = [1, 1]} : vector<8x256xf32> to vector<8x128xf32>
    %46 = vector.extract_strided_slice %33 {offsets = [0, 256], sizes = [8, 128], strides = [1, 1]} : vector<8x384xf32> to vector<8x128xf32>
    %47 = vector.extract_strided_slice %35 {offsets = [0, 256], sizes = [8, 128], strides = [1, 1]} : vector<8x384xf32> to vector<8x128xf32>
    %48 = arith.addf %47, %10 : vector<8x128xf32>
    %49 = arith.mulf %44, %48 : vector<8x128xf32>
    %50 = arith.addf %46, %49 : vector<8x128xf32>
    %51 = math.tanh %50 : vector<8x128xf32>
    %52 = arith.subf %30, %51 : vector<8x128xf32>
    %53 = arith.mulf %45, %52 : vector<8x128xf32>
    %54 = arith.addf %51, %53 : vector<8x128xf32>
    %55 = vector.extract_strided_slice %6 {offsets = [8, 0], sizes = [8, 384], strides = [1, 1]} : vector<64x384xf32> to vector<8x384xf32>
    %56 = vector.extract_strided_slice %6 {offsets = [48, 0], sizes = [8, 384], strides = [1, 1]} : vector<64x384xf32> to vector<8x384xf32>
    %57 = arith.select %29, %55, %56 : vector<8x384xi1>, vector<8x384xf32>
    %58 = arith.truncf %54 : vector<8x128xf32> to vector<8x128xbf16>
    %cst_16 = arith.constant dense<0.000000e+00> : vector<8x384xf32>
    %59 = tpu.matmul %58, %7, %cst_16 {dimension_numbers = #tpu.dot_dimension_numbers<[1], [0], [0], [1], [0, 0, 1, 1], [], []>} : vector<8x128xbf16>, vector<128x384xbf16>, vector<8x384xf32> -> vector<8x384xf32>
    %60 = vector.extract_strided_slice %57 {offsets = [0, 0], sizes = [8, 256], strides = [1, 1]} : vector<8x384xf32> to vector<8x256xf32>
    %61 = vector.extract_strided_slice %59 {offsets = [0, 0], sizes = [8, 256], strides = [1, 1]} : vector<8x384xf32> to vector<8x256xf32>
    %62 = arith.addf %60, %61 : vector<8x256xf32>
    %63 = arith.negf %62 : vector<8x256xf32>
    %64 = math.exp %63 : vector<8x256xf32>
    %cst_17 = arith.constant 1.000000e+00 : f32
    %65 = vector.broadcast %cst_17 : f32 to vector<8x256xf32>
    %66 = arith.addf %65, %64 : vector<8x256xf32>
    %67 = arith.divf %65, %66 : vector<8x256xf32>
    %68 = vector.extract_strided_slice %67 {offsets = [0, 0], sizes = [8, 128], strides = [1, 1]} : vector<8x256xf32> to vector<8x128xf32>
    %69 = vector.extract_strided_slice %67 {offsets = [0, 128], sizes = [8, 128], strides = [1, 1]} : vector<8x256xf32> to vector<8x128xf32>
    %70 = vector.extract_strided_slice %57 {offsets = [0, 256], sizes = [8, 128], strides = [1, 1]} : vector<8x384xf32> to vector<8x128xf32>
    %71 = vector.extract_strided_slice %59 {offsets = [0, 256], sizes = [8, 128], strides = [1, 1]} : vector<8x384xf32> to vector<8x128xf32>
    %72 = arith.addf %71, %10 : vector<8x128xf32>
    %73 = arith.mulf %68, %72 : vector<8x128xf32>
    %74 = arith.addf %70, %73 : vector<8x128xf32>
    %75 = math.tanh %74 : vector<8x128xf32>
    %76 = arith.subf %54, %75 : vector<8x128xf32>
    %77 = arith.mulf %69, %76 : vector<8x128xf32>
    %78 = arith.addf %75, %77 : vector<8x128xf32>
    %79 = vector.extract_strided_slice %6 {offsets = [16, 0], sizes = [8, 384], strides = [1, 1]} : vector<64x384xf32> to vector<8x384xf32>
    %80 = vector.extract_strided_slice %6 {offsets = [40, 0], sizes = [8, 384], strides = [1, 1]} : vector<64x384xf32> to vector<8x384xf32>
    %81 = arith.select %29, %79, %80 : vector<8x384xi1>, vector<8x384xf32>
    %82 = arith.truncf %78 : vector<8x128xf32> to vector<8x128xbf16>
    %cst_18 = arith.constant dense<0.000000e+00> : vector<8x384xf32>
    %83 = tpu.matmul %82, %7, %cst_18 {dimension_numbers = #tpu.dot_dimension_numbers<[1], [0], [0], [1], [0, 0, 1, 1], [], []>} : vector<8x128xbf16>, vector<128x384xbf16>, vector<8x384xf32> -> vector<8x384xf32>
    %84 = vector.extract_strided_slice %81 {offsets = [0, 0], sizes = [8, 256], strides = [1, 1]} : vector<8x384xf32> to vector<8x256xf32>
    %85 = vector.extract_strided_slice %83 {offsets = [0, 0], sizes = [8, 256], strides = [1, 1]} : vector<8x384xf32> to vector<8x256xf32>
    %86 = arith.addf %84, %85 : vector<8x256xf32>
    %87 = arith.negf %86 : vector<8x256xf32>
    %88 = math.exp %87 : vector<8x256xf32>
    %cst_19 = arith.constant 1.000000e+00 : f32
    %89 = vector.broadcast %cst_19 : f32 to vector<8x256xf32>
    %90 = arith.addf %89, %88 : vector<8x256xf32>
    %91 = arith.divf %89, %90 : vector<8x256xf32>
    %92 = vector.extract_strided_slice %91 {offsets = [0, 0], sizes = [8, 128], strides = [1, 1]} : vector<8x256xf32> to vector<8x128xf32>
    %93 = vector.extract_strided_slice %91 {offsets = [0, 128], sizes = [8, 128], strides = [1, 1]} : vector<8x256xf32> to vector<8x128xf32>
    %94 = vector.extract_strided_slice %81 {offsets = [0, 256], sizes = [8, 128], strides = [1, 1]} : vector<8x384xf32> to vector<8x128xf32>
    %95 = vector.extract_strided_slice %83 {offsets = [0, 256], sizes = [8, 128], strides = [1, 1]} : vector<8x384xf32> to vector<8x128xf32>
    %96 = arith.addf %95, %10 : vector<8x128xf32>
    %97 = arith.mulf %92, %96 : vector<8x128xf32>
    %98 = arith.addf %94, %97 : vector<8x128xf32>
    %99 = math.tanh %98 : vector<8x128xf32>
    %100 = arith.subf %78, %99 : vector<8x128xf32>
    %101 = arith.mulf %93, %100 : vector<8x128xf32>
    %102 = arith.addf %99, %101 : vector<8x128xf32>
    %103 = vector.extract_strided_slice %6 {offsets = [24, 0], sizes = [8, 384], strides = [1, 1]} : vector<64x384xf32> to vector<8x384xf32>
    %104 = vector.extract_strided_slice %6 {offsets = [32, 0], sizes = [8, 384], strides = [1, 1]} : vector<64x384xf32> to vector<8x384xf32>
    %105 = arith.select %29, %103, %104 : vector<8x384xi1>, vector<8x384xf32>
    %106 = arith.truncf %102 : vector<8x128xf32> to vector<8x128xbf16>
    %cst_20 = arith.constant dense<0.000000e+00> : vector<8x384xf32>
    %107 = tpu.matmul %106, %7, %cst_20 {dimension_numbers = #tpu.dot_dimension_numbers<[1], [0], [0], [1], [0, 0, 1, 1], [], []>} : vector<8x128xbf16>, vector<128x384xbf16>, vector<8x384xf32> -> vector<8x384xf32>
    %108 = vector.extract_strided_slice %105 {offsets = [0, 0], sizes = [8, 256], strides = [1, 1]} : vector<8x384xf32> to vector<8x256xf32>
    %109 = vector.extract_strided_slice %107 {offsets = [0, 0], sizes = [8, 256], strides = [1, 1]} : vector<8x384xf32> to vector<8x256xf32>
    %110 = arith.addf %108, %109 : vector<8x256xf32>
    %111 = arith.negf %110 : vector<8x256xf32>
    %112 = math.exp %111 : vector<8x256xf32>
    %cst_21 = arith.constant 1.000000e+00 : f32
    %113 = vector.broadcast %cst_21 : f32 to vector<8x256xf32>
    %114 = arith.addf %113, %112 : vector<8x256xf32>
    %115 = arith.divf %113, %114 : vector<8x256xf32>
    %116 = vector.extract_strided_slice %115 {offsets = [0, 0], sizes = [8, 128], strides = [1, 1]} : vector<8x256xf32> to vector<8x128xf32>
    %117 = vector.extract_strided_slice %115 {offsets = [0, 128], sizes = [8, 128], strides = [1, 1]} : vector<8x256xf32> to vector<8x128xf32>
    %118 = vector.extract_strided_slice %105 {offsets = [0, 256], sizes = [8, 128], strides = [1, 1]} : vector<8x384xf32> to vector<8x128xf32>
    %119 = vector.extract_strided_slice %107 {offsets = [0, 256], sizes = [8, 128], strides = [1, 1]} : vector<8x384xf32> to vector<8x128xf32>
    %120 = arith.addf %119, %10 : vector<8x128xf32>
    %121 = arith.mulf %116, %120 : vector<8x128xf32>
    %122 = arith.addf %118, %121 : vector<8x128xf32>
    %123 = math.tanh %122 : vector<8x128xf32>
    %124 = arith.subf %102, %123 : vector<8x128xf32>
    %125 = arith.mulf %117, %124 : vector<8x128xf32>
    %126 = arith.addf %123, %125 : vector<8x128xf32>
    %127 = vector.extract_strided_slice %6 {offsets = [32, 0], sizes = [8, 384], strides = [1, 1]} : vector<64x384xf32> to vector<8x384xf32>
    %128 = vector.extract_strided_slice %6 {offsets = [24, 0], sizes = [8, 384], strides = [1, 1]} : vector<64x384xf32> to vector<8x384xf32>
    %129 = arith.select %29, %127, %128 : vector<8x384xi1>, vector<8x384xf32>
    %130 = arith.truncf %126 : vector<8x128xf32> to vector<8x128xbf16>
    %cst_22 = arith.constant dense<0.000000e+00> : vector<8x384xf32>
    %131 = tpu.matmul %130, %7, %cst_22 {dimension_numbers = #tpu.dot_dimension_numbers<[1], [0], [0], [1], [0, 0, 1, 1], [], []>} : vector<8x128xbf16>, vector<128x384xbf16>, vector<8x384xf32> -> vector<8x384xf32>
    %132 = vector.extract_strided_slice %129 {offsets = [0, 0], sizes = [8, 256], strides = [1, 1]} : vector<8x384xf32> to vector<8x256xf32>
    %133 = vector.extract_strided_slice %131 {offsets = [0, 0], sizes = [8, 256], strides = [1, 1]} : vector<8x384xf32> to vector<8x256xf32>
    %134 = arith.addf %132, %133 : vector<8x256xf32>
    %135 = arith.negf %134 : vector<8x256xf32>
    %136 = math.exp %135 : vector<8x256xf32>
    %cst_23 = arith.constant 1.000000e+00 : f32
    %137 = vector.broadcast %cst_23 : f32 to vector<8x256xf32>
    %138 = arith.addf %137, %136 : vector<8x256xf32>
    %139 = arith.divf %137, %138 : vector<8x256xf32>
    %140 = vector.extract_strided_slice %139 {offsets = [0, 0], sizes = [8, 128], strides = [1, 1]} : vector<8x256xf32> to vector<8x128xf32>
    %141 = vector.extract_strided_slice %139 {offsets = [0, 128], sizes = [8, 128], strides = [1, 1]} : vector<8x256xf32> to vector<8x128xf32>
    %142 = vector.extract_strided_slice %129 {offsets = [0, 256], sizes = [8, 128], strides = [1, 1]} : vector<8x384xf32> to vector<8x128xf32>
    %143 = vector.extract_strided_slice %131 {offsets = [0, 256], sizes = [8, 128], strides = [1, 1]} : vector<8x384xf32> to vector<8x128xf32>
    %144 = arith.addf %143, %10 : vector<8x128xf32>
    %145 = arith.mulf %140, %144 : vector<8x128xf32>
    %146 = arith.addf %142, %145 : vector<8x128xf32>
    %147 = math.tanh %146 : vector<8x128xf32>
    %148 = arith.subf %126, %147 : vector<8x128xf32>
    %149 = arith.mulf %141, %148 : vector<8x128xf32>
    %150 = arith.addf %147, %149 : vector<8x128xf32>
    %151 = vector.extract_strided_slice %6 {offsets = [40, 0], sizes = [8, 384], strides = [1, 1]} : vector<64x384xf32> to vector<8x384xf32>
    %152 = vector.extract_strided_slice %6 {offsets = [16, 0], sizes = [8, 384], strides = [1, 1]} : vector<64x384xf32> to vector<8x384xf32>
    %153 = arith.select %29, %151, %152 : vector<8x384xi1>, vector<8x384xf32>
    %154 = arith.truncf %150 : vector<8x128xf32> to vector<8x128xbf16>
    %cst_24 = arith.constant dense<0.000000e+00> : vector<8x384xf32>
    %155 = tpu.matmul %154, %7, %cst_24 {dimension_numbers = #tpu.dot_dimension_numbers<[1], [0], [0], [1], [0, 0, 1, 1], [], []>} : vector<8x128xbf16>, vector<128x384xbf16>, vector<8x384xf32> -> vector<8x384xf32>
    %156 = vector.extract_strided_slice %153 {offsets = [0, 0], sizes = [8, 256], strides = [1, 1]} : vector<8x384xf32> to vector<8x256xf32>
    %157 = vector.extract_strided_slice %155 {offsets = [0, 0], sizes = [8, 256], strides = [1, 1]} : vector<8x384xf32> to vector<8x256xf32>
    %158 = arith.addf %156, %157 : vector<8x256xf32>
    %159 = arith.negf %158 : vector<8x256xf32>
    %160 = math.exp %159 : vector<8x256xf32>
    %cst_25 = arith.constant 1.000000e+00 : f32
    %161 = vector.broadcast %cst_25 : f32 to vector<8x256xf32>
    %162 = arith.addf %161, %160 : vector<8x256xf32>
    %163 = arith.divf %161, %162 : vector<8x256xf32>
    %164 = vector.extract_strided_slice %163 {offsets = [0, 0], sizes = [8, 128], strides = [1, 1]} : vector<8x256xf32> to vector<8x128xf32>
    %165 = vector.extract_strided_slice %163 {offsets = [0, 128], sizes = [8, 128], strides = [1, 1]} : vector<8x256xf32> to vector<8x128xf32>
    %166 = vector.extract_strided_slice %153 {offsets = [0, 256], sizes = [8, 128], strides = [1, 1]} : vector<8x384xf32> to vector<8x128xf32>
    %167 = vector.extract_strided_slice %155 {offsets = [0, 256], sizes = [8, 128], strides = [1, 1]} : vector<8x384xf32> to vector<8x128xf32>
    %168 = arith.addf %167, %10 : vector<8x128xf32>
    %169 = arith.mulf %164, %168 : vector<8x128xf32>
    %170 = arith.addf %166, %169 : vector<8x128xf32>
    %171 = math.tanh %170 : vector<8x128xf32>
    %172 = arith.subf %150, %171 : vector<8x128xf32>
    %173 = arith.mulf %165, %172 : vector<8x128xf32>
    %174 = arith.addf %171, %173 : vector<8x128xf32>
    %175 = vector.extract_strided_slice %6 {offsets = [48, 0], sizes = [8, 384], strides = [1, 1]} : vector<64x384xf32> to vector<8x384xf32>
    %176 = vector.extract_strided_slice %6 {offsets = [8, 0], sizes = [8, 384], strides = [1, 1]} : vector<64x384xf32> to vector<8x384xf32>
    %177 = arith.select %29, %175, %176 : vector<8x384xi1>, vector<8x384xf32>
    %178 = arith.truncf %174 : vector<8x128xf32> to vector<8x128xbf16>
    %cst_26 = arith.constant dense<0.000000e+00> : vector<8x384xf32>
    %179 = tpu.matmul %178, %7, %cst_26 {dimension_numbers = #tpu.dot_dimension_numbers<[1], [0], [0], [1], [0, 0, 1, 1], [], []>} : vector<8x128xbf16>, vector<128x384xbf16>, vector<8x384xf32> -> vector<8x384xf32>
    %180 = vector.extract_strided_slice %177 {offsets = [0, 0], sizes = [8, 256], strides = [1, 1]} : vector<8x384xf32> to vector<8x256xf32>
    %181 = vector.extract_strided_slice %179 {offsets = [0, 0], sizes = [8, 256], strides = [1, 1]} : vector<8x384xf32> to vector<8x256xf32>
    %182 = arith.addf %180, %181 : vector<8x256xf32>
    %183 = arith.negf %182 : vector<8x256xf32>
    %184 = math.exp %183 : vector<8x256xf32>
    %cst_27 = arith.constant 1.000000e+00 : f32
    %185 = vector.broadcast %cst_27 : f32 to vector<8x256xf32>
    %186 = arith.addf %185, %184 : vector<8x256xf32>
    %187 = arith.divf %185, %186 : vector<8x256xf32>
    %188 = vector.extract_strided_slice %187 {offsets = [0, 0], sizes = [8, 128], strides = [1, 1]} : vector<8x256xf32> to vector<8x128xf32>
    %189 = vector.extract_strided_slice %187 {offsets = [0, 128], sizes = [8, 128], strides = [1, 1]} : vector<8x256xf32> to vector<8x128xf32>
    %190 = vector.extract_strided_slice %177 {offsets = [0, 256], sizes = [8, 128], strides = [1, 1]} : vector<8x384xf32> to vector<8x128xf32>
    %191 = vector.extract_strided_slice %179 {offsets = [0, 256], sizes = [8, 128], strides = [1, 1]} : vector<8x384xf32> to vector<8x128xf32>
    %192 = arith.addf %191, %10 : vector<8x128xf32>
    %193 = arith.mulf %188, %192 : vector<8x128xf32>
    %194 = arith.addf %190, %193 : vector<8x128xf32>
    %195 = math.tanh %194 : vector<8x128xf32>
    %196 = arith.subf %174, %195 : vector<8x128xf32>
    %197 = arith.mulf %189, %196 : vector<8x128xf32>
    %198 = arith.addf %195, %197 : vector<8x128xf32>
    %199 = vector.extract_strided_slice %6 {offsets = [56, 0], sizes = [8, 384], strides = [1, 1]} : vector<64x384xf32> to vector<8x384xf32>
    %200 = vector.extract_strided_slice %6 {offsets = [0, 0], sizes = [8, 384], strides = [1, 1]} : vector<64x384xf32> to vector<8x384xf32>
    %201 = arith.select %29, %199, %200 : vector<8x384xi1>, vector<8x384xf32>
    %202 = arith.truncf %198 : vector<8x128xf32> to vector<8x128xbf16>
    %cst_28 = arith.constant dense<0.000000e+00> : vector<8x384xf32>
    %203 = tpu.matmul %202, %7, %cst_28 {dimension_numbers = #tpu.dot_dimension_numbers<[1], [0], [0], [1], [0, 0, 1, 1], [], []>} : vector<8x128xbf16>, vector<128x384xbf16>, vector<8x384xf32> -> vector<8x384xf32>
    %204 = vector.extract_strided_slice %201 {offsets = [0, 0], sizes = [8, 256], strides = [1, 1]} : vector<8x384xf32> to vector<8x256xf32>
    %205 = vector.extract_strided_slice %203 {offsets = [0, 0], sizes = [8, 256], strides = [1, 1]} : vector<8x384xf32> to vector<8x256xf32>
    %206 = arith.addf %204, %205 : vector<8x256xf32>
    %207 = arith.negf %206 : vector<8x256xf32>
    %208 = math.exp %207 : vector<8x256xf32>
    %cst_29 = arith.constant 1.000000e+00 : f32
    %209 = vector.broadcast %cst_29 : f32 to vector<8x256xf32>
    %210 = arith.addf %209, %208 : vector<8x256xf32>
    %211 = arith.divf %209, %210 : vector<8x256xf32>
    %212 = vector.extract_strided_slice %211 {offsets = [0, 0], sizes = [8, 128], strides = [1, 1]} : vector<8x256xf32> to vector<8x128xf32>
    %213 = vector.extract_strided_slice %211 {offsets = [0, 128], sizes = [8, 128], strides = [1, 1]} : vector<8x256xf32> to vector<8x128xf32>
    %214 = vector.extract_strided_slice %201 {offsets = [0, 256], sizes = [8, 128], strides = [1, 1]} : vector<8x384xf32> to vector<8x128xf32>
    %215 = vector.extract_strided_slice %203 {offsets = [0, 256], sizes = [8, 128], strides = [1, 1]} : vector<8x384xf32> to vector<8x128xf32>
    %216 = arith.addf %215, %10 : vector<8x128xf32>
    %217 = arith.mulf %212, %216 : vector<8x128xf32>
    %218 = arith.addf %214, %217 : vector<8x128xf32>
    %219 = math.tanh %218 : vector<8x128xf32>
    %220 = arith.subf %198, %219 : vector<8x128xf32>
    %221 = arith.mulf %213, %220 : vector<8x128xf32>
    %222 = arith.addf %219, %221 : vector<8x128xf32>
    %c0_30 = arith.constant 0 : index
    %c0_31 = arith.constant 0 : index
    %223 = vector.load %arg6[%c0_30, %c0_31] : memref<128x32xf32, #tpu.memory_space<vmem>>, vector<128x32xf32>
    %cst_32 = arith.constant dense<0.000000e+00> : vector<8x32xf32>
    %224 = tpu.matmul %54, %223, %cst_32 {dimension_numbers = #tpu.dot_dimension_numbers<[1], [0], [0], [1], [0, 0, 1, 1], [], []>} : vector<8x128xf32>, vector<128x32xf32>, vector<8x32xf32> -> vector<8x32xf32>
    %c0_33 = arith.constant 0 : index
    %c0_34 = arith.constant 0 : index
    %225 = vector.load %arg7[%c0_33, %c0_34] : memref<128x32xf32, #tpu.memory_space<vmem>>, vector<128x32xf32>
    %cst_35 = arith.constant dense<0.000000e+00> : vector<8x32xf32>
    %226 = tpu.matmul %222, %225, %cst_35 {dimension_numbers = #tpu.dot_dimension_numbers<[1], [0], [0], [1], [0, 0, 1, 1], [], []>} : vector<8x128xf32>, vector<128x32xf32>, vector<8x32xf32> -> vector<8x32xf32>
    %227 = arith.addf %224, %226 : vector<8x32xf32>
    %c0_36 = arith.constant 0 : index
    %c0_37 = arith.constant 0 : index
    %228 = vector.load %arg8[%c0_36, %c0_37] : memref<1x32xf32, #tpu.memory_space<vmem>>, vector<1x32xf32>
    %229 = vector.broadcast %228 : vector<1x32xf32> to vector<8x32xf32>
    %230 = arith.addf %227, %229 : vector<8x32xf32>
    %cst_38 = arith.constant 0.000000e+00 : f32
    %231 = vector.broadcast %cst_38 : f32 to vector<8x32xf32>
    %232 = arith.cmpf oge, %230, %231 : vector<8x32xf32>
    %cst_39 = arith.constant 0.00999999977 : f32
    %233 = vector.broadcast %cst_39 : f32 to vector<8x32xf32>
    %234 = arith.mulf %233, %230 : vector<8x32xf32>
    %235 = arith.select %232, %230, %234 : vector<8x32xi1>, vector<8x32xf32>
    %c0_40 = arith.constant 0 : index
    %c0_41 = arith.constant 0 : index
    %236 = vector.load %arg9[%c0_40, %c0_41] : memref<32x1xf32, #tpu.memory_space<vmem>>, vector<32x1xf32>
    %cst_42 = arith.constant dense<0.000000e+00> : vector<8x1xf32>
    %237 = tpu.matmul %235, %236, %cst_42 {dimension_numbers = #tpu.dot_dimension_numbers<[1], [0], [0], [1], [0, 0, 1, 1], [], []>} : vector<8x32xf32>, vector<32x1xf32>, vector<8x1xf32> -> vector<8x1xf32>
    %c0_43 = arith.constant 0 : index
    %c0_44 = arith.constant 0 : index
    %238 = vector.load %arg10[%c0_43, %c0_44] : memref<1x1xf32, #tpu.memory_space<vmem>>, vector<1x1xf32>
    %239 = vector.broadcast %238 : vector<1x1xf32> to vector<8x1xf32>
    %240 = arith.addf %237, %239 : vector<8x1xf32>
    %c0_45 = arith.constant 0 : index
    %c0_46 = arith.constant 0 : index
    %241 = vector.load %arg11[%c0_45, %c0_46] : memref<8x1xf32, #tpu.memory_space<vmem>>, vector<8x1xf32>
    tpu.vector_store %arg11[%c0_45, %c0_46], %240 {strides = array<i32>} : memref<8x1xf32, #tpu.memory_space<vmem>>, vector<8x1xf32>,
    return
  }
  func.func @transform_0(%arg0: i32) -> (i32, i32, i32) {
    %c0_i32 = arith.constant 0 : i32
    %c0_i32_0 = arith.constant 0 : i32
    %c0_i32_1 = arith.constant 0 : i32
    return %arg0, %c0_i32, %c0_i32_0 : i32, i32, i32
  }
  func.func @transform_1(%arg0: i32) -> (i32, i32) {
    %c0_i32 = arith.constant 0 : i32
    %c0_i32_0 = arith.constant 0 : i32
    %c0_i32_1 = arith.constant 0 : i32
    return %c0_i32, %c0_i32_0 : i32, i32
  }
  func.func @transform_2(%arg0: i32) -> (i32, i32) {
    %c0_i32 = arith.constant 0 : i32
    %c0_i32_0 = arith.constant 0 : i32
    %c0_i32_1 = arith.constant 0 : i32
    return %c0_i32, %c0_i32_0 : i32, i32
  }
  func.func @transform_3(%arg0: i32) -> (i32, i32) {
    %c0_i32 = arith.constant 0 : i32
    %c0_i32_0 = arith.constant 0 : i32
    %c0_i32_1 = arith.constant 0 : i32
    return %c0_i32, %c0_i32_0 : i32, i32
  }
  func.func @transform_4(%arg0: i32) -> (i32, i32) {
    %c0_i32 = arith.constant 0 : i32
    %c0_i32_0 = arith.constant 0 : i32
    %c0_i32_1 = arith.constant 0 : i32
    return %c0_i32, %c0_i32_0 : i32, i32
  }
  func.func @transform_5(%arg0: i32) -> (i32, i32) {
    %c0_i32 = arith.constant 0 : i32
    %c0_i32_0 = arith.constant 0 : i32
    %c0_i32_1 = arith.constant 0 : i32
    return %c0_i32, %c0_i32_0 : i32, i32
  }
  func.func @transform_6(%arg0: i32) -> (i32, i32) {
    %c0_i32 = arith.constant 0 : i32
    %c0_i32_0 = arith.constant 0 : i32
    %c0_i32_1 = arith.constant 0 : i32
    return %c0_i32, %c0_i32_0 : i32, i32
  }
  func.func @transform_7(%arg0: i32) -> (i32, i32) {
    %c0_i32 = arith.constant 0 : i32
    %c0_i32_0 = arith.constant 0 : i32
    %c0_i32_1 = arith.constant 0 : i32
    return %c0_i32, %c0_i32_0 : i32, i32
  }
  func.func @transform_8(%arg0: i32) -> (i32, i32) {
    %c0_i32 = arith.constant 0 : i32
    %c0_i32_0 = arith.constant 0 : i32
    %c0_i32_1 = arith.constant 0 : i32
    return %c0_i32, %c0_i32_0 : i32, i32
  }
  func.func @transform_9(%arg0: i32) -> (i32, i32) {
    %c0_i32 = arith.constant 0 : i32
    %c0_i32_0 = arith.constant 0 : i32
    %c0_i32_1 = arith.constant 0 : i32
    return %c0_i32, %c0_i32_0 : i32, i32
  }
  func.func @transform_10(%arg0: i32) -> (i32, i32) {
    %c0_i32 = arith.constant 0 : i32
    %c0_i32_0 = arith.constant 0 : i32
    return %arg0, %c0_i32 : i32, i32
  }
}

</mosaic_0001>

<llo_original>
// kernel: tpu_custom_call.1
$region0: #{tpu_custom_call.1}
  #allocation0 [shape = 'u32[]', space=smem, size = 0x4, offset = 0x4, fixed_abs, tag = 'smem constant byte address 0x4 - core index']
  #allocation1 [shape = 'u32[72,128]{1,0:T(1,128)}', space=vmem, size = 0x9000, scoped, tag = 'internal scratch']
  #allocation2 [shape = 'f32[1,1]{1,0:T(1,128)S(1)}', space=vmem, size = 0x200, scoped, tag = 'scoped memory for tpu_custom_call.1']
  %s0 = inlined_call_operand.vmem [shape: bf16[1,64,300], index: 0, kind: input, shape index: {}]
  %s1 = inlined_call_operand.hbm [shape: bf16[300,384], index: 1, kind: input, shape index: {}]
  %s2 = inlined_call_operand.vmem [shape: f32[1,384], index: 2, kind: input, shape index: {}]
  %s3 = inlined_call_operand.vmem [shape: bf16[128,384], index: 3, kind: input, shape index: {}]
  %s4 = inlined_call_operand.vmem [shape: f32[1,128], index: 4, kind: input, shape index: {}]
  %s5 = inlined_call_operand.vmem [shape: f32[128,32], index: 5, kind: input, shape index: {}]
  %s6 = inlined_call_operand.vmem [shape: f32[128,32], index: 6, kind: input, shape index: {}]
  %s7 = inlined_call_operand.vmem [shape: f32[1,32], index: 7, kind: input, shape index: {}]
  %s8 = inlined_call_operand.vmem [shape: f32[32,1], index: 8, kind: input, shape index: {}]
  %s9 = inlined_call_operand.<no memory space> [shape: f32[1,1], index: 9, kind: input, shape index: {}]
  %s10 = inlined_call_operand.vmem [shape: f32[8,1], index: 10, kind: output, shape index: {}]
  %s11 = sld [smem:[#allocation0]]
  $region54: #{tpu_custom_call.1} parent=0
    _
  %s13 = ssub.s32 1, %s11
  %s14 = scalar_select 0, %s13, %s11
  %v15 = vstv %s9
  %16 = vst [vmem:[#allocation2] sm:$0x1] %v15
  $region1: #{tpu_custom_call.1} parent=0
    #allocation3 [shape = 'u8[233472]{0}', space=vmem, size = 0x39000, scoped, tag = 'input window, operand 1, single buffered']
    #allocation4 [shape = 's32[1]{0}', space=sflag, size = 0x4, scoped, tag = 'scoped memory for tpu_custom_call.1']
    %17 = vsyncpa [#allocation4], 0
    // Predicated region
    $region2: #{tpu_custom_call.1} parent=1 // pred_check
      _
    $region3: #{tpu_custom_call.1} parent=1 // pred_check_branch
      %19 = sbr.rel (0) target = $region5
    $region4: #{tpu_custom_call.1} parent=1 // pred_region
      _
    $region5: #{tpu_custom_call.1} parent=1 // pred_fallthru
      _
    // Predicated region
    $region6: #{tpu_custom_call.1} parent=1 // pred_check
      _
    $region7: #{tpu_custom_call.1} parent=1 // pred_check_branch
      %21 = sbr.rel (0) target = $region9
    $region8: #{tpu_custom_call.1} parent=1 // pred_region
      %23 = vsyncadd [#allocation4], 0
      %s24 = sshll.u32 %s1, 4
      %s25 = int_to_ptr.hbm [resolvable:$true] %s24
      %s26 = sshll.u32 [#allocation3], 4
      %s27 = int_to_ptr.vmem [resolvable:$true] %s26
      %32 = dma.hbm_to_vmem [thread:$0]  %s25, 7296, %s27, [#allocation4], 192, 192, 12
    $region9: #{tpu_custom_call.1} parent=1 // pred_fallthru
      _
    // Predicated region
    $region10: #{tpu_custom_call.1} parent=1 // pred_check
      _
    $region11: #{tpu_custom_call.1} parent=1 // pred_check_branch
      %34 = sbr.rel (0) target = $region13
    $region12: #{tpu_custom_call.1} parent=1 // pred_region
      _
    $region13: #{tpu_custom_call.1} parent=1 // pred_fallthru
      _
    // Predicated region
    $region14: #{tpu_custom_call.1} parent=1 // pred_check
      _
    $region15: #{tpu_custom_call.1} parent=1 // pred_check_branch
      %36 = sbr.rel (0) target = $region17
    $region16: #{tpu_custom_call.1} parent=1 // pred_region
      _
    $region17: #{tpu_custom_call.1} parent=1 // pred_fallthru
      _
    // Predicated region
    $region18: #{tpu_custom_call.1} parent=1 // pred_check
      _
    $region19: #{tpu_custom_call.1} parent=1 // pred_check_branch
      %38 = sbr.rel (0) target = $region21
    $region20: #{tpu_custom_call.1} parent=1 // pred_region
      _
    $region21: #{tpu_custom_call.1} parent=1 // pred_fallthru
      _
    // Predicated region
    $region22: #{tpu_custom_call.1} parent=1 // pred_check
      _
    $region23: #{tpu_custom_call.1} parent=1 // pred_check_branch
      %40 = sbr.rel (0) target = $region25
    $region24: #{tpu_custom_call.1} parent=1 // pred_region
      _
    $region25: #{tpu_custom_call.1} parent=1 // pred_fallthru
      _
    // Predicated region
    $region26: #{tpu_custom_call.1} parent=1 // pred_check
      _
    $region27: #{tpu_custom_call.1} parent=1 // pred_check_branch
      %42 = sbr.rel (0) target = $region29
    $region28: #{tpu_custom_call.1} parent=1 // pred_region
      _
    $region29: #{tpu_custom_call.1} parent=1 // pred_fallthru
      _
    // Predicated region
    $region30: #{tpu_custom_call.1} parent=1 // pred_check
      _
    $region31: #{tpu_custom_call.1} parent=1 // pred_check_branch
      %44 = sbr.rel (0) target = $region33
    $region32: #{tpu_custom_call.1} parent=1 // pred_region
      _
    $region33: #{tpu_custom_call.1} parent=1 // pred_fallthru
      _
    // Predicated region
    $region34: #{tpu_custom_call.1} parent=1 // pred_check
      _
    $region35: #{tpu_custom_call.1} parent=1 // pred_check_branch
      %46 = sbr.rel (0) target = $region37
    $region36: #{tpu_custom_call.1} parent=1 // pred_region
      _
    $region37: #{tpu_custom_call.1} parent=1 // pred_fallthru
      _
    // Predicated region
    $region38: #{tpu_custom_call.1} parent=1 // pred_check
      _
    $region39: #{tpu_custom_call.1} parent=1 // pred_check_branch
      %48 = sbr.rel (0) target = $region41
    $region40: #{tpu_custom_call.1} parent=1 // pred_region
      _
    $region41: #{tpu_custom_call.1} parent=1 // pred_fallthru
      _
    // Predicated region
    $region42: #{tpu_custom_call.1} parent=1 // pred_check
      _
    $region43: #{tpu_custom_call.1} parent=1 // pred_check_branch
      %50 = sbr.rel (0) target = $region45
    $region44: #{tpu_custom_call.1} parent=1 // pred_region
      %52 = dma.done [#allocation4], 7296
    $region45: #{tpu_custom_call.1} parent=1 // pred_fallthru
      _
    %v54 = vld [vmem:[%s0] sm:$0xff]
    %v55 = vld [vmem:[%s0 + $0x8] sm:$0xf]
    %v56 = vld [vmem:[%s0 + $0xc] sm:$0xff]
    %v57 = vld [vmem:[%s0 + $0x14] sm:$0xf]
    %v58 = vld [vmem:[%s0 + $0x18] sm:$0xff]
    %v59 = vld [vmem:[%s0 + $0x20] sm:$0xf]
    %v60 = vld [vmem:[%s0 + $0x24] sm:$0xff]
    %v61 = vld [vmem:[%s0 + $0x2c] sm:$0xf]
    %v62 = vld [vmem:[%s0 + $0x30] sm:$0xff]
    %v63 = vld [vmem:[%s0 + $0x38] sm:$0xf]
    %v64 = vld [vmem:[%s0 + $0x3c] sm:$0xff]
    %v65 = vld [vmem:[%s0 + $0x44] sm:$0xf]
    %v66 = vld [vmem:[%s0 + $0x48] sm:$0xff]
    %v67 = vld [vmem:[%s0 + $0x50] sm:$0xf]
    %v68 = vld [vmem:[%s0 + $0x54] sm:$0xff]
    %v69 = vld [vmem:[%s0 + $0x5c] sm:$0xf]
    %v70 = vld [vmem:[#allocation3] sm:$0xff]
    %v71 = vld [vmem:[#allocation3 + $0x8] sm:$0xf]
    %v72 = vld [vmem:[#allocation3 + $0xc] sm:$0xff]
    %v73 = vld [vmem:[#allocation3 + $0x14] sm:$0xf]
    %v74 = vld [vmem:[#allocation3 + $0x18] sm:$0xff]
    %v75 = vld [vmem:[#allocation3 + $0x20] sm:$0xf]
    %v76 = vld [vmem:[#allocation3 + $0x24] sm:$0xff]
    %v77 = vld [vmem:[#allocation3 + $0x2c] sm:$0xf]
    %v78 = vld [vmem:[#allocation3 + $0x30] sm:$0xff]
    %v79 = vld [vmem:[#allocation3 + $0x38] sm:$0xf]
    %v80 = vld [vmem:[#allocation3 + $0x3c] sm:$0xff]
    %v81 = vld [vmem:[#allocation3 + $0x44] sm:$0xf]
    %v82 = vld [vmem:[#allocation3 + $0x48] sm:$0xff]
    %v83 = vld [vmem:[#allocation3 + $0x50] sm:$0xf]
    %v84 = vld [vmem:[#allocation3 + $0x54] sm:$0xff]
    %v85 = vld [vmem:[#allocation3 + $0x5c] sm:$0xf]
    %v86 = vld [vmem:[#allocation3 + $0x60] sm:$0xff]
    %v87 = vld [vmem:[#allocation3 + $0x68] sm:$0xf]
    %v88 = vld [vmem:[#allocation3 + $0x6c] sm:$0xff]
    %v89 = vld [vmem:[#allocation3 + $0x74] sm:$0xf]
    %v90 = vld [vmem:[#allocation3 + $0x78] sm:$0xff]
    %v91 = vld [vmem:[#allocation3 + $0x80] sm:$0xf]
    %v92 = vld [vmem:[#allocation3 + $0x84] sm:$0xff]
    %v93 = vld [vmem:[#allocation3 + $0x8c] sm:$0xf]
    %v94 = vld [vmem:[#allocation3 + $0x90] sm:$0xff]
    %v95 = vld [vmem:[#allocation3 + $0x98] sm:$0xf]
    %v96 = vld [vmem:[#allocation3 + $0x9c] sm:$0xff]
    %v97 = vld [vmem:[#allocation3 + $0xa4] sm:$0xf]
    %v98 = vld [vmem:[#allocation3 + $0xa8] sm:$0xff]
    %v99 = vld [vmem:[#allocation3 + $0xb0] sm:$0xf]
    %v100 = vld [vmem:[#allocation3 + $0xb4] sm:$0xff]
    %v101 = vld [vmem:[#allocation3 + $0xbc] sm:$0xf]
    %v102 = vld [vmem:[#allocation3 + $0xc0] sm:$0xff]
    %v103 = vld [vmem:[#allocation3 + $0xc8] sm:$0xf]
    %v104 = vld [vmem:[#allocation3 + $0xcc] sm:$0xff]
    %v105 = vld [vmem:[#allocation3 + $0xd4] sm:$0xf]
    %v106 = vld [vmem:[#allocation3 + $0xd8] sm:$0xff]
    %v107 = vld [vmem:[#allocation3 + $0xe0] sm:$0xf]
    %v108 = vld [vmem:[#allocation3 + $0xe4] sm:$0xff]
    %v109 = vld [vmem:[#allocation3 + $0xec] sm:$0xf]
    %v110 = vld [vmem:[#allocation3 + $0xf0] sm:$0xff]
    %v111 = vld [vmem:[#allocation3 + $0xf8] sm:$0xf]
    %v112 = vld [vmem:[#allocation3 + $0xfc] sm:$0xff]
    %v113 = vld [vmem:[#allocation3 + $0x104] sm:$0xf]
    %v114 = vld [vmem:[#allocation3 + $0x108] sm:$0xff]
    %v115 = vld [vmem:[#allocation3 + $0x110] sm:$0xf]
    %v116 = vld [vmem:[#allocation3 + $0x114] sm:$0xff]
    %v117 = vld [vmem:[#allocation3 + $0x11c] sm:$0xf]
    %v118 = vld [vmem:[#allocation3 + $0x120] sm:$0xff]
    %v119 = vld [vmem:[#allocation3 + $0x128] sm:$0xf]
    %v120 = vld [vmem:[#allocation3 + $0x12c] sm:$0xff]
    %v121 = vld [vmem:[#allocation3 + $0x134] sm:$0xf]
    %v122 = vld [vmem:[#allocation3 + $0x138] sm:$0xff]
    %v123 = vld [vmem:[#allocation3 + $0x140] sm:$0xf]
    %v124 = vld [vmem:[#allocation3 + $0x144] sm:$0xff]
    %v125 = vld [vmem:[#allocation3 + $0x14c] sm:$0xf]
    %v126 = vld [vmem:[#allocation3 + $0x150] sm:$0xff]
    %v127 = vld [vmem:[#allocation3 + $0x158] sm:$0xf]
    %v128 = vld [vmem:[#allocation3 + $0x15c] sm:$0xff]
    %v129 = vld [vmem:[#allocation3 + $0x164] sm:$0xf]
    %v130 = vld [vmem:[#allocation3 + $0x168] sm:$0xff]
    %v131 = vld [vmem:[#allocation3 + $0x170] sm:$0xf]
    %v132 = vld [vmem:[#allocation3 + $0x174] sm:$0xff]
    %v133 = vld [vmem:[#allocation3 + $0x17c] sm:$0xf]
    %v134 = vld [vmem:[#allocation3 + $0x180] sm:$0xff]
    %v135 = vld [vmem:[#allocation3 + $0x188] sm:$0xf]
    %v136 = vld [vmem:[#allocation3 + $0x18c] sm:$0xff]
    %v137 = vld [vmem:[#allocation3 + $0x194] sm:$0xf]
    %v138 = vld [vmem:[#allocation3 + $0x198] sm:$0xff]
    %v139 = vld [vmem:[#allocation3 + $0x1a0] sm:$0xf]
    %v140 = vld [vmem:[#allocation3 + $0x1a4] sm:$0xff]
    %v141 = vld [vmem:[#allocation3 + $0x1ac] sm:$0xf]
    %v142 = vld [vmem:[#allocation3 + $0x1b0] sm:$0xff]
    %v143 = vld [vmem:[#allocation3 + $0x1b8] sm:$0xf]
    %v144 = vld [vmem:[#allocation3 + $0x1bc] sm:$0x33]
    %v145 = vld [vmem:[#allocation3 + $0x1c4] sm:$0x3]
    %v146 = vld [vmem:[%s2] sm:$0x7]
    %v148 = vperm.slane %v146, 0
    %v149 = vperm.slane %v146, 1
    %v150 = vperm.slane %v146, 2
    %v170 = vunpack.c.l.b16 %v54
    %v171 = vunpack.c.h.b16 %v54
    %v172 = vunpack.c.l.b16 %v55
    %v173 = vunpack.c.l.b16 %v56
    %v174 = vunpack.c.h.b16 %v56
    %v175 = vunpack.c.l.b16 %v57
    %v176 = vunpack.c.l.b16 %v58
    %v177 = vunpack.c.h.b16 %v58
    %v178 = vunpack.c.l.b16 %v59
    %v179 = vunpack.c.l.b16 %v60
    %v180 = vunpack.c.h.b16 %v60
    %v181 = vunpack.c.l.b16 %v61
    %v182 = vunpack.c.l.b16 %v62
    %v183 = vunpack.c.h.b16 %v62
    %v184 = vunpack.c.l.b16 %v63
    %v185 = vunpack.c.l.b16 %v64
    %v186 = vunpack.c.h.b16 %v64
    %v187 = vunpack.c.l.b16 %v65
    %v188 = vunpack.c.l.b16 %v66
    %v189 = vunpack.c.h.b16 %v66
    %v190 = vunpack.c.l.b16 %v67
    %v191 = vunpack.c.l.b16 %v68
    %v192 = vunpack.c.h.b16 %v68
    %v193 = vunpack.c.l.b16 %v69
    %v194 = vpack.c.b16 %v173, %v170
    %v195 = vpack.c.b16 %v174, %v171
    %v196 = vpack.c.b16 %v175, %v172
    %v197 = vpack.c.b16 %v179, %v176
    %v198 = vpack.c.b16 %v180, %v177
    %v199 = vpack.c.b16 %v181, %v178
    %v200 = vpack.c.b16 %v185, %v182
    %v201 = vpack.c.b16 %v186, %v183
    %v202 = vpack.c.b16 %v187, %v184
    %v203 = vpack.c.b16 %v191, %v188
    %v204 = vpack.c.b16 %v192, %v189
    %v205 = vpack.c.b16 %v193, %v190
    %v290 = vunpack.c.l.b16 %v70
    %v291 = vunpack.c.h.b16 %v70
    %v292 = vunpack.c.l.b16 %v71
    %v293 = vunpack.c.l.b16 %v72
    %v294 = vunpack.c.h.b16 %v72
    %v295 = vunpack.c.l.b16 %v73
    %v296 = vunpack.c.l.b16 %v74
    %v297 = vunpack.c.h.b16 %v74
    %v298 = vunpack.c.l.b16 %v75
    %v299 = vunpack.c.l.b16 %v76
    %v300 = vunpack.c.h.b16 %v76
    %v301 = vunpack.c.l.b16 %v77
    %v302 = vunpack.c.l.b16 %v78
    %v303 = vunpack.c.h.b16 %v78
    %v304 = vunpack.c.l.b16 %v79
    %v305 = vunpack.c.l.b16 %v80
    %v306 = vunpack.c.h.b16 %v80
    %v307 = vunpack.c.l.b16 %v81
    %v308 = vunpack.c.l.b16 %v82
    %v309 = vunpack.c.h.b16 %v82
    %v310 = vunpack.c.l.b16 %v83
    %v311 = vunpack.c.l.b16 %v84
    %v312 = vunpack.c.h.b16 %v84
    %v313 = vunpack.c.l.b16 %v85
    %v314 = vunpack.c.l.b16 %v86
    %v315 = vunpack.c.h.b16 %v86
    %v316 = vunpack.c.l.b16 %v87
    %v317 = vunpack.c.l.b16 %v88
    %v318 = vunpack.c.h.b16 %v88
    %v319 = vunpack.c.l.b16 %v89
    %v320 = vunpack.c.l.b16 %v90
    %v321 = vunpack.c.h.b16 %v90
    %v322 = vunpack.c.l.b16 %v91
    %v323 = vunpack.c.l.b16 %v92
    %v324 = vunpack.c.h.b16 %v92
    %v325 = vunpack.c.l.b16 %v93
    %v326 = vunpack.c.l.b16 %v94
    %v327 = vunpack.c.h.b16 %v94
    %v328 = vunpack.c.l.b16 %v95
    %v329 = vunpack.c.l.b16 %v96
    %v330 = vunpack.c.h.b16 %v96
    %v331 = vunpack.c.l.b16 %v97
    %v332 = vunpack.c.l.b16 %v98
    %v333 = vunpack.c.h.b16 %v98
    %v334 = vunpack.c.l.b16 %v99
    %v335 = vunpack.c.l.b16 %v100
    %v336 = vunpack.c.h.b16 %v100
    %v337 = vunpack.c.l.b16 %v101
    %v338 = vunpack.c.l.b16 %v102
    %v339 = vunpack.c.h.b16 %v102
    %v340 = vunpack.c.l.b16 %v103
    %v341 = vunpack.c.l.b16 %v104
    %v342 = vunpack.c.h.b16 %v104
    %v343 = vunpack.c.l.b16 %v105
    %v344 = vunpack.c.l.b16 %v106
    %v345 = vunpack.c.h.b16 %v106
    %v346 = vunpack.c.l.b16 %v107
    %v347 = vunpack.c.l.b16 %v108
    %v348 = vunpack.c.h.b16 %v108
    %v349 = vunpack.c.l.b16 %v109
    %v350 = vunpack.c.l.b16 %v110
    %v351 = vunpack.c.h.b16 %v110
    %v352 = vunpack.c.l.b16 %v111
    %v353 = vunpack.c.l.b16 %v112
    %v354 = vunpack.c.h.b16 %v112
    %v355 = vunpack.c.l.b16 %v113
    %v356 = vunpack.c.l.b16 %v114
    %v357 = vunpack.c.h.b16 %v114
    %v358 = vunpack.c.l.b16 %v115
    %v359 = vunpack.c.l.b16 %v116
    %v360 = vunpack.c.h.b16 %v116
    %v361 = vunpack.c.l.b16 %v117
    %v362 = vunpack.c.l.b16 %v118
    %v363 = vunpack.c.h.b16 %v118
    %v364 = vunpack.c.l.b16 %v119
    %v365 = vunpack.c.l.b16 %v120
    %v366 = vunpack.c.h.b16 %v120
    %v367 = vunpack.c.l.b16 %v121
    %v368 = vunpack.c.l.b16 %v122
    %v369 = vunpack.c.h.b16 %v122
    %v370 = vunpack.c.l.b16 %v123
    %v371 = vunpack.c.l.b16 %v124
    %v372 = vunpack.c.h.b16 %v124
    %v373 = vunpack.c.l.b16 %v125
    %v374 = vunpack.c.l.b16 %v126
    %v375 = vunpack.c.h.b16 %v126
    %v376 = vunpack.c.l.b16 %v127
    %v377 = vunpack.c.l.b16 %v128
    %v378 = vunpack.c.h.b16 %v128
    %v379 = vunpack.c.l.b16 %v129
    %v380 = vunpack.c.l.b16 %v130
    %v381 = vunpack.c.h.b16 %v130
    %v382 = vunpack.c.l.b16 %v131
    %v383 = vunpack.c.l.b16 %v132
    %v384 = vunpack.c.h.b16 %v132
    %v385 = vunpack.c.l.b16 %v133
    %v386 = vunpack.c.l.b16 %v134
    %v387 = vunpack.c.h.b16 %v134
    %v388 = vunpack.c.l.b16 %v135
    %v389 = vunpack.c.l.b16 %v136
    %v390 = vunpack.c.h.b16 %v136
    %v391 = vunpack.c.l.b16 %v137
    %v392 = vunpack.c.l.b16 %v138
    %v393 = vunpack.c.h.b16 %v138
    %v394 = vunpack.c.l.b16 %v139
    %v395 = vunpack.c.l.b16 %v140
    %v396 = vunpack.c.h.b16 %v140
    %v397 = vunpack.c.l.b16 %v141
    %v398 = vunpack.c.l.b16 %v142
    %v399 = vunpack.c.h.b16 %v142
    %v400 = vunpack.c.l.b16 %v143
    %v401 = vunpack.c.l.b16 %v144
    %v402 = vunpack.c.h.b16 %v144
    %v403 = vunpack.c.l.b16 %v145
    %v404 = vpack.c.b16 %v293, %v290
    %v405 = vpack.c.b16 %v294, %v291
    %v406 = vpack.c.b16 %v295, %v292
    %v407 = vpack.c.b16 %v299, %v296
    %v408 = vpack.c.b16 %v300, %v297
    %v409 = vpack.c.b16 %v301, %v298
    %v410 = vpack.c.b16 %v305, %v302
    %v411 = vpack.c.b16 %v306, %v303
    %v412 = vpack.c.b16 %v307, %v304
    %v413 = vpack.c.b16 %v311, %v308
    %v414 = vpack.c.b16 %v312, %v309
    %v415 = vpack.c.b16 %v313, %v310
    %v416 = vpack.c.b16 %v317, %v314
    %v417 = vpack.c.b16 %v318, %v315
    %v418 = vpack.c.b16 %v319, %v316
    %v419 = vpack.c.b16 %v323, %v320
    %v420 = vpack.c.b16 %v324, %v321
    %v421 = vpack.c.b16 %v325, %v322
    %v422 = vpack.c.b16 %v329, %v326
    %v423 = vpack.c.b16 %v330, %v327
    %v424 = vpack.c.b16 %v331, %v328
    %v425 = vpack.c.b16 %v335, %v332
    %v426 = vpack.c.b16 %v336, %v333
    %v427 = vpack.c.b16 %v337, %v334
    %v428 = vpack.c.b16 %v341, %v338
    %v429 = vpack.c.b16 %v342, %v339
    %v430 = vpack.c.b16 %v343, %v340
    %v431 = vpack.c.b16 %v347, %v344
    %v432 = vpack.c.b16 %v348, %v345
    %v433 = vpack.c.b16 %v349, %v346
    %v434 = vpack.c.b16 %v353, %v350
    %v435 = vpack.c.b16 %v354, %v351
    %v436 = vpack.c.b16 %v355, %v352
    %v437 = vpack.c.b16 %v359, %v356
    %v438 = vpack.c.b16 %v360, %v357
    %v439 = vpack.c.b16 %v361, %v358
    %v440 = vpack.c.b16 %v365, %v362
    %v441 = vpack.c.b16 %v366, %v363
    %v442 = vpack.c.b16 %v367, %v364
    %v443 = vpack.c.b16 %v371, %v368
    %v444 = vpack.c.b16 %v372, %v369
    %v445 = vpack.c.b16 %v373, %v370
    %v446 = vpack.c.b16 %v377, %v374
    %v447 = vpack.c.b16 %v378, %v375
    %v448 = vpack.c.b16 %v379, %v376
    %v449 = vpack.c.b16 %v383, %v380
    %v450 = vpack.c.b16 %v384, %v381
    %v451 = vpack.c.b16 %v385, %v382
    %v452 = vpack.c.b16 %v389, %v386
    %v453 = vpack.c.b16 %v390, %v387
    %v454 = vpack.c.b16 %v391, %v388
    %v455 = vpack.c.b16 %v395, %v392
    %v456 = vpack.c.b16 %v396, %v393
    %v457 = vpack.c.b16 %v397, %v394
    %v458 = vpack.c.b16 %v401, %v398
    %v459 = vpack.c.b16 %v402, %v399
    %v460 = vpack.c.b16 %v403, %v400
    %vm515 = vcmask 359424
    %v517 = vsel %vm515, %v196, 0
    %v520 = vsel %vm515, %v199, 0
    %v523 = vsel %vm515, %v202, 0
    %v526 = vsel %vm515, %v205, 0
    %vm528 = vcmask 1045504
    %v530 = vsel %vm528, %v458, 0
    %v533 = vsel %vm528, %v459, 0
    %v536 = vsel %vm528, %v460, 0
    %538 = vmatpush.bf16.msra.mxu0 %v425
    %539 = vmatpush.bf16.msra.mxu0 %v422
    %540 = vmatpush.bf16.msra.mxu0 %v419
    %541 = vmatpush.bf16.msra.mxu0 %v416
    %542 = vmatpush.bf16.msra.mxu0 %v413
    %543 = vmatpush.bf16.msra.mxu0 %v410
    %544 = vmatpush.bf16.msra.mxu0 %v407
    %545 = vmatpush.bf16.msra.mxu0 %v404
    %546 = vmatmul.bf16.gmra.mxu0 %v194
    %v547 = vpop.f32.mrf.mxu0
    %v548 = vadd.f32 %v148, %v547
    %v549 = vpop.f32.mrf.mxu0
    %v550 = vadd.f32 %v148, %v549
    %551 = vmatmul.bf16.gmra.mxu0 %v197
    %v552 = vpop.f32.mrf.mxu0
    %v553 = vadd.f32 %v148, %v552
    %v554 = vpop.f32.mrf.mxu0
    %v555 = vadd.f32 %v148, %v554
    %556 = vmatmul.bf16.gmra.mxu0 %v200
    %v557 = vpop.f32.mrf.mxu0
    %v558 = vadd.f32 %v148, %v557
    %v559 = vpop.f32.mrf.mxu0
    %v560 = vadd.f32 %v148, %v559
    %561 = vmatmul.bf16.gmra.mxu0 %v203
    %v562 = vpop.f32.mrf.mxu0
    %v563 = vadd.f32 %v148, %v562
    %v564 = vpop.f32.mrf.mxu0
    %v565 = vadd.f32 %v148, %v564
    %566 = vdwg.mxu0
    %567 = vmatpush.bf16.msra.mxu0 %v449
    %568 = vmatpush.bf16.msra.mxu0 %v446
    %569 = vmatpush.bf16.msra.mxu0 %v443
    %570 = vmatpush.bf16.msra.mxu0 %v440
    %571 = vmatpush.bf16.msra.mxu0 %v437
    %572 = vmatpush.bf16.msra.mxu0 %v434
    %573 = vmatpush.bf16.msra.mxu0 %v431
    %574 = vmatpush.bf16.msra.mxu0 %v428
    %575 = vmatmul.bf16.gmra.mxu0 %v195
    %v576 = vpop.f32.mrf.mxu0
    %v577 = vadd.f32 %v548, %v576
    %v578 = vpop.f32.mrf.mxu0
    %v579 = vadd.f32 %v550, %v578
    %580 = vmatmul.bf16.gmra.mxu0 %v198
    %v581 = vpop.f32.mrf.mxu0
    %v582 = vadd.f32 %v553, %v581
    %v583 = vpop.f32.mrf.mxu0
    %v584 = vadd.f32 %v555, %v583
    %585 = vmatmul.bf16.gmra.mxu0 %v201
    %v586 = vpop.f32.mrf.mxu0
    %v587 = vadd.f32 %v558, %v586
    %v588 = vpop.f32.mrf.mxu0
    %v589 = vadd.f32 %v560, %v588
    %590 = vmatmul.bf16.gmra.mxu0 %v204
    %v591 = vpop.f32.mrf.mxu0
    %v592 = vadd.f32 %v563, %v591
    %v593 = vpop.f32.mrf.mxu0
    %v594 = vadd.f32 %v565, %v593
    %595 = vdwg.mxu0
    %596 = vmatpush.bf16.msra.mxu0 0
    %597 = vmatpush.bf16.msra.mxu0 0
    %598 = vmatpush.bf16.msra.mxu0 0
    %599 = vmatpush.bf16.msra.mxu0 0
    %600 = vmatpush.bf16.msra.mxu0 0
    %601 = vmatpush.bf16.msra.mxu0 %v530
    %602 = vmatpush.bf16.msra.mxu0 %v455
    %603 = vmatpush.bf16.msra.mxu0 %v452
    %604 = vmatmul.bf16.gmra.mxu0 %v517
    %v605 = vpop.f32.mrf.mxu0
    %v606 = vadd.f32 %v577, %v605
    %v607 = vpop.f32.mrf.mxu0
    %v608 = vadd.f32 %v579, %v607
    %609 = vmatmul.bf16.gmra.mxu0 %v520
    %v610 = vpop.f32.mrf.mxu0
    %v611 = vadd.f32 %v582, %v610
    %v612 = vpop.f32.mrf.mxu0
    %v613 = vadd.f32 %v584, %v612
    %614 = vmatmul.bf16.gmra.mxu0 %v523
    %v615 = vpop.f32.mrf.mxu0
    %v616 = vadd.f32 %v587, %v615
    %v617 = vpop.f32.mrf.mxu0
    %v618 = vadd.f32 %v589, %v617
    %619 = vmatmul.bf16.gmra.mxu0 %v526
    %v620 = vpop.f32.mrf.mxu0
    %v621 = vadd.f32 %v592, %v620
    %v622 = vpop.f32.mrf.mxu0
    %v623 = vadd.f32 %v594, %v622
    %624 = vdwg.mxu0
    %625 = vmatpush.bf16.msra.mxu0 %v426
    %626 = vmatpush.bf16.msra.mxu0 %v423
    %627 = vmatpush.bf16.msra.mxu0 %v420
    %628 = vmatpush.bf16.msra.mxu0 %v417
    %629 = vmatpush.bf16.msra.mxu0 %v414
    %630 = vmatpush.bf16.msra.mxu0 %v411
    %631 = vmatpush.bf16.msra.mxu0 %v408
    %632 = vmatpush.bf16.msra.mxu0 %v405
    %633 = vmatmul.bf16.gmra.mxu0 %v194
    %v634 = vpop.f32.mrf.mxu0
    %v635 = vadd.f32 %v149, %v634
    %v636 = vpop.f32.mrf.mxu0
    %v637 = vadd.f32 %v149, %v636
    %638 = vmatmul.bf16.gmra.mxu0 %v197
    %v639 = vpop.f32.mrf.mxu0
    %v640 = vadd.f32 %v149, %v639
    %v641 = vpop.f32.mrf.mxu0
    %v642 = vadd.f32 %v149, %v641
    %643 = vmatmul.bf16.gmra.mxu0 %v200
    %v644 = vpop.f32.mrf.mxu0
    %v645 = vadd.f32 %v149, %v644
    %v646 = vpop.f32.mrf.mxu0
    %v647 = vadd.f32 %v149, %v646
    %648 = vmatmul.bf16.gmra.mxu0 %v203
    %v649 = vpop.f32.mrf.mxu0
    %v650 = vadd.f32 %v149, %v649
    %v651 = vpop.f32.mrf.mxu0
    %v652 = vadd.f32 %v149, %v651
    %653 = vdwg.mxu0
    %654 = vmatpush.bf16.msra.mxu0 %v450
    %655 = vmatpush.bf16.msra.mxu0 %v447
    %656 = vmatpush.bf16.msra.mxu0 %v444
    %657 = vmatpush.bf16.msra.mxu0 %v441
    %658 = vmatpush.bf16.msra.mxu0 %v438
    %659 = vmatpush.bf16.msra.mxu0 %v435
    %660 = vmatpush.bf16.msra.mxu0 %v432
    %661 = vmatpush.bf16.msra.mxu0 %v429
    %662 = vmatmul.bf16.gmra.mxu0 %v195
    %v663 = vpop.f32.mrf.mxu0
    %v664 = vadd.f32 %v635, %v663
    %v665 = vpop.f32.mrf.mxu0
    %v666 = vadd.f32 %v637, %v665
    %667 = vmatmul.bf16.gmra.mxu0 %v198
    %v668 = vpop.f32.mrf.mxu0
    %v669 = vadd.f32 %v640, %v668
    %v670 = vpop.f32.mrf.mxu0
    %v671 = vadd.f32 %v642, %v670
    %672 = vmatmul.bf16.gmra.mxu0 %v201
    %v673 = vpop.f32.mrf.mxu0
    %v674 = vadd.f32 %v645, %v673
    %v675 = vpop.f32.mrf.mxu0
    %v676 = vadd.f32 %v647, %v675
    %677 = vmatmul.bf16.gmra.mxu0 %v204
    %v678 = vpop.f32.mrf.mxu0
    %v679 = vadd.f32 %v650, %v678
    %v680 = vpop.f32.mrf.mxu0
    %v681 = vadd.f32 %v652, %v680
    %682 = vdwg.mxu0
    %683 = vmatpush.bf16.msra.mxu0 0
    %684 = vmatpush.bf16.msra.mxu0 0
    %685 = vmatpush.bf16.msra.mxu0 0
    %686 = vmatpush.bf16.msra.mxu0 0
    %687 = vmatpush.bf16.msra.mxu0 0
    %688 = vmatpush.bf16.msra.mxu0 %v533
    %689 = vmatpush.bf16.msra.mxu0 %v456
    %690 = vmatpush.bf16.msra.mxu0 %v453
    %691 = vmatmul.bf16.gmra.mxu0 %v517
    %v692 = vpop.f32.mrf.mxu0
    %v693 = vadd.f32 %v664, %v692
    %v694 = vpop.f32.mrf.mxu0
    %v695 = vadd.f32 %v666, %v694
    %696 = vmatmul.bf16.gmra.mxu0 %v520
    %v697 = vpop.f32.mrf.mxu0
    %v698 = vadd.f32 %v669, %v697
    %v699 = vpop.f32.mrf.mxu0
    %v700 = vadd.f32 %v671, %v699
    %701 = vmatmul.bf16.gmra.mxu0 %v523
    %v702 = vpop.f32.mrf.mxu0
    %v703 = vadd.f32 %v674, %v702
    %v704 = vpop.f32.mrf.mxu0
    %v705 = vadd.f32 %v676, %v704
    %706 = vmatmul.bf16.gmra.mxu0 %v526
    %v707 = vpop.f32.mrf.mxu0
    %v708 = vadd.f32 %v679, %v707
    %v709 = vpop.f32.mrf.mxu0
    %v710 = vadd.f32 %v681, %v709
    %711 = vdwg.mxu0
    %712 = vmatpush.bf16.msra.mxu0 %v427
    %713 = vmatpush.bf16.msra.mxu0 %v424
    %714 = vmatpush.bf16.msra.mxu0 %v421
    %715 = vmatpush.bf16.msra.mxu0 %v418
    %716 = vmatpush.bf16.msra.mxu0 %v415
    %717 = vmatpush.bf16.msra.mxu0 %v412
    %718 = vmatpush.bf16.msra.mxu0 %v409
    %719 = vmatpush.bf16.msra.mxu0 %v406
    %720 = vmatmul.bf16.gmra.mxu0 %v194
    %v721 = vpop.f32.mrf.mxu0
    %v722 = vadd.f32 %v150, %v721
    %v723 = vpop.f32.mrf.mxu0
    %v724 = vadd.f32 %v150, %v723
    %725 = vmatmul.bf16.gmra.mxu0 %v197
    %v726 = vpop.f32.mrf.mxu0
    %v727 = vadd.f32 %v150, %v726
    %v728 = vpop.f32.mrf.mxu0
    %v729 = vadd.f32 %v150, %v728
    %730 = vmatmul.bf16.gmra.mxu0 %v200
    %v731 = vpop.f32.mrf.mxu0
    %v732 = vadd.f32 %v150, %v731
    %v733 = vpop.f32.mrf.mxu0
    %v734 = vadd.f32 %v150, %v733
    %735 = vmatmul.bf16.gmra.mxu0 %v203
    %v736 = vpop.f32.mrf.mxu0
    %v737 = vadd.f32 %v150, %v736
    %v738 = vpop.f32.mrf.mxu0
    %v739 = vadd.f32 %v150, %v738
    %740 = vdwg.mxu0
    %741 = vmatpush.bf16.msra.mxu0 %v451
    %742 = vmatpush.bf16.msra.mxu0 %v448
    %743 = vmatpush.bf16.msra.mxu0 %v445
    %744 = vmatpush.bf16.msra.mxu0 %v442
    %745 = vmatpush.bf16.msra.mxu0 %v439
    %746 = vmatpush.bf16.msra.mxu0 %v436
    %747 = vmatpush.bf16.msra.mxu0 %v433
    %748 = vmatpush.bf16.msra.mxu0 %v430
    %749 = vmatmul.bf16.gmra.mxu0 %v195
    %v750 = vpop.f32.mrf.mxu0
    %v751 = vadd.f32 %v722, %v750
    %v752 = vpop.f32.mrf.mxu0
    %v753 = vadd.f32 %v724, %v752
    %754 = vmatmul.bf16.gmra.mxu0 %v198
    %v755 = vpop.f32.mrf.mxu0
    %v756 = vadd.f32 %v727, %v755
    %v757 = vpop.f32.mrf.mxu0
    %v758 = vadd.f32 %v729, %v757
    %759 = vmatmul.bf16.gmra.mxu0 %v201
    %v760 = vpop.f32.mrf.mxu0
    %v761 = vadd.f32 %v732, %v760
    %v762 = vpop.f32.mrf.mxu0
    %v763 = vadd.f32 %v734, %v762
    %764 = vmatmul.bf16.gmra.mxu0 %v204
    %v765 = vpop.f32.mrf.mxu0
    %v766 = vadd.f32 %v737, %v765
    %v767 = vpop.f32.mrf.mxu0
    %v768 = vadd.f32 %v739, %v767
    %769 = vdwg.mxu0
    %770 = vmatpush.bf16.msra.mxu0 0
    %771 = vmatpush.bf16.msra.mxu0 0
    %772 = vmatpush.bf16.msra.mxu0 0
    %773 = vmatpush.bf16.msra.mxu0 0
    %774 = vmatpush.bf16.msra.mxu0 0
    %775 = vmatpush.bf16.msra.mxu0 %v536
    %776 = vmatpush.bf16.msra.mxu0 %v457
    %777 = vmatpush.bf16.msra.mxu0 %v454
    %778 = vmatmul.bf16.gmra.mxu0 %v517
    %v779 = vpop.f32.mrf.mxu0
    %v780 = vadd.f32 %v751, %v779
    %v781 = vpop.f32.mrf.mxu0
    %v782 = vadd.f32 %v753, %v781
    %783 = vmatmul.bf16.gmra.mxu0 %v520
    %v784 = vpop.f32.mrf.mxu0
    %v785 = vadd.f32 %v756, %v784
    %v786 = vpop.f32.mrf.mxu0
    %v787 = vadd.f32 %v758, %v786
    %788 = vmatmul.bf16.gmra.mxu0 %v523
    %v789 = vpop.f32.mrf.mxu0
    %v790 = vadd.f32 %v761, %v789
    %v791 = vpop.f32.mrf.mxu0
    %v792 = vadd.f32 %v763, %v791
    %793 = vmatmul.bf16.gmra.mxu0 %v526
    %v794 = vpop.f32.mrf.mxu0
    %v795 = vadd.f32 %v766, %v794
    %v796 = vpop.f32.mrf.mxu0
    %v797 = vadd.f32 %v768, %v796
    %798 = vdwg.mxu0
    %v799 = vld [vmem:[%s3] sm:$0xff]
    %v800 = vld [vmem:[%s3 + $0x8] sm:$0xf]
    %v801 = vld [vmem:[%s3 + $0xc] sm:$0xff]
    %v802 = vld [vmem:[%s3 + $0x14] sm:$0xf]
    %v803 = vld [vmem:[%s3 + $0x18] sm:$0xff]
    %v804 = vld [vmem:[%s3 + $0x20] sm:$0xf]
    %v805 = vld [vmem:[%s3 + $0x24] sm:$0xff]
    %v806 = vld [vmem:[%s3 + $0x2c] sm:$0xf]
    %v807 = vld [vmem:[%s3 + $0x30] sm:$0xff]
    %v808 = vld [vmem:[%s3 + $0x38] sm:$0xf]
    %v809 = vld [vmem:[%s3 + $0x3c] sm:$0xff]
    %v810 = vld [vmem:[%s3 + $0x44] sm:$0xf]
    %v811 = vld [vmem:[%s3 + $0x48] sm:$0xff]
    %v812 = vld [vmem:[%s3 + $0x50] sm:$0xf]
    %v813 = vld [vmem:[%s3 + $0x54] sm:$0xff]
    %v814 = vld [vmem:[%s3 + $0x5c] sm:$0xf]
    %v815 = vld [vmem:[%s3 + $0x60] sm:$0xff]
    %v816 = vld [vmem:[%s3 + $0x68] sm:$0xf]
    %v817 = vld [vmem:[%s3 + $0x6c] sm:$0xff]
    %v818 = vld [vmem:[%s3 + $0x74] sm:$0xf]
    %v819 = vld [vmem:[%s3 + $0x78] sm:$0xff]
    %v820 = vld [vmem:[%s3 + $0x80] sm:$0xf]
    %v821 = vld [vmem:[%s3 + $0x84] sm:$0xff]
    %v822 = vld [vmem:[%s3 + $0x8c] sm:$0xf]
    %v823 = vld [vmem:[%s3 + $0x90] sm:$0xff]
    %v824 = vld [vmem:[%s3 + $0x98] sm:$0xf]
    %v825 = vld [vmem:[%s3 + $0x9c] sm:$0xff]
    %v826 = vld [vmem:[%s3 + $0xa4] sm:$0xf]
    %v827 = vld [vmem:[%s3 + $0xa8] sm:$0xff]
    %v828 = vld [vmem:[%s3 + $0xb0] sm:$0xf]
    %v829 = vld [vmem:[%s3 + $0xb4] sm:$0xff]
    %v830 = vld [vmem:[%s3 + $0xbc] sm:$0xf]
    %v831 = vld [vmem:[%s4] sm:$0x1]
    %v833 = vperm.slane %v831, 0
    %v835 = vlaneseq
    %v836 = vand.u32 %v835, 127
    %v837 = vadd.s32 %v836, 128
    %v838 = vadd.s32 %v836, 256
    %vm839 = vcmp.lt.s32.totalorder %v836, 0
    %v840 = vsub.s32 0, %v836
    %v841 = vsel %vm839, %v840, %v836
    %v842 = vshrl.u32 %v841, 7
    %v843 = vand.u32 %v841, 127
    %v844 = vsub.s32 0, %v843
    %v845 = vsel %vm839, %v844, %v843
    %vm846 = vcmp.lt.s32.totalorder %v837, 0
    %v847 = vsub.s32 0, %v837
    %v848 = vsel %vm846, %v847, %v837
    %v849 = vshrl.u32 %v848, 7
    %v850 = vand.u32 %v848, 127
    %v851 = vsub.s32 0, %v850
    %v852 = vsel %vm846, %v851, %v850
    %vm853 = vcmp.lt.s32.totalorder %v838, 0
    %v854 = vsub.s32 0, %v838
    %v855 = vsel %vm853, %v854, %v838
    %v856 = vshrl.u32 %v855, 7
    %v857 = vand.u32 %v855, 127
    %v858 = vsub.s32 0, %v857
    %v859 = vsel %vm853, %v858, %v857
    %vm860 = vcmp.ne.s32.totalorder %v845, 0
    %vm861 = vcmp.ne.s32.totalorder %v852, 0
    %vm862 = vcmp.ne.s32.totalorder %v859, 0
    %vm863 = vcmp.lt.s32.totalorder %v845, 0
    %vm864 = vcmp.lt.s32.totalorder %v852, 0
    %vm865 = vcmp.lt.s32.totalorder %v859, 0
    %vm866 = vmand %vm863, %vm860
    %vm867 = vmand %vm864, %vm861
    %vm868 = vmand %vm865, %vm862
    %v869 = vadd.s32 %v845, 128
    %v870 = vadd.s32 %v852, 128
    %v871 = vadd.s32 %v859, 128
    %v872 = vsel %vm866, %v869, %v845
    %v873 = vsel %vm867, %v870, %v852
    %v874 = vsel %vm868, %v871, %v859
    %vm875 = vcmp.lt.s32.totalorder %v872, 64
    %vm876 = vcmp.lt.s32.totalorder %v873, 64
    %vm877 = vcmp.lt.s32.totalorder %v874, 64
    %v878 = vsel %vm875, %v606, %v623
    %v879 = vsel %vm876, %v693, %v710
    %v880 = vsel %vm877, %v780, %v797
    %v913 = vunpack.c.l.b16 %v799
    %v914 = vunpack.c.h.b16 %v799
    %v915 = vunpack.c.l.b16 %v800
    %v916 = vunpack.c.l.b16 %v801
    %v917 = vunpack.c.h.b16 %v801
    %v918 = vunpack.c.l.b16 %v802
    %v919 = vunpack.c.l.b16 %v803
    %v920 = vunpack.c.h.b16 %v803
    %v921 = vunpack.c.l.b16 %v804
    %v922 = vunpack.c.l.b16 %v805
    %v923 = vunpack.c.h.b16 %v805
    %v924 = vunpack.c.l.b16 %v806
    %v925 = vunpack.c.l.b16 %v807
    %v926 = vunpack.c.h.b16 %v807
    %v927 = vunpack.c.l.b16 %v808
    %v928 = vunpack.c.l.b16 %v809
    %v929 = vunpack.c.h.b16 %v809
    %v930 = vunpack.c.l.b16 %v810
    %v931 = vunpack.c.l.b16 %v811
    %v932 = vunpack.c.h.b16 %v811
    %v933 = vunpack.c.l.b16 %v812
    %v934 = vunpack.c.l.b16 %v813
    %v935 = vunpack.c.h.b16 %v813
    %v936 = vunpack.c.l.b16 %v814
    %v937 = vunpack.c.l.b16 %v815
    %v938 = vunpack.c.h.b16 %v815
    %v939 = vunpack.c.l.b16 %v816
    %v940 = vunpack.c.l.b16 %v817
    %v941 = vunpack.c.h.b16 %v817
    %v942 = vunpack.c.l.b16 %v818
    %v943 = vunpack.c.l.b16 %v819
    %v944 = vunpack.c.h.b16 %v819
    %v945 = vunpack.c.l.b16 %v820
    %v946 = vunpack.c.l.b16 %v821
    %v947 = vunpack.c.h.b16 %v821
    %v948 = vunpack.c.l.b16 %v822
    %v949 = vunpack.c.l.b16 %v823
    %v950 = vunpack.c.h.b16 %v823
    %v951 = vunpack.c.l.b16 %v824
    %v952 = vunpack.c.l.b16 %v825
    %v953 = vunpack.c.h.b16 %v825
    %v954 = vunpack.c.l.b16 %v826
    %v955 = vunpack.c.l.b16 %v827
    %v956 = vunpack.c.h.b16 %v827
    %v957 = vunpack.c.l.b16 %v828
    %v958 = vunpack.c.l.b16 %v829
    %v959 = vunpack.c.h.b16 %v829
    %v960 = vunpack.c.l.b16 %v830
    %v961 = vpack.c.b16 %v916, %v913
    %v962 = vpack.c.b16 %v917, %v914
    %v963 = vpack.c.b16 %v918, %v915
    %v964 = vpack.c.b16 %v922, %v919
    %v965 = vpack.c.b16 %v923, %v920
    %v966 = vpack.c.b16 %v924, %v921
    %v967 = vpack.c.b16 %v928, %v925
    %v968 = vpack.c.b16 %v929, %v926
    %v969 = vpack.c.b16 %v930, %v927
    %v970 = vpack.c.b16 %v934, %v931
    %v971 = vpack.c.b16 %v935, %v932
    %v972 = vpack.c.b16 %v936, %v933
    %v973 = vpack.c.b16 %v940, %v937
    %v974 = vpack.c.b16 %v941, %v938
    %v975 = vpack.c.b16 %v942, %v939
    %v976 = vpack.c.b16 %v946, %v943
    %v977 = vpack.c.b16 %v947, %v944
    %v978 = vpack.c.b16 %v948, %v945
    %v979 = vpack.c.b16 %v952, %v949
    %v980 = vpack.c.b16 %v953, %v950
    %v981 = vpack.c.b16 %v954, %v951
    %v982 = vpack.c.b16 %v958, %v955
    %v983 = vpack.c.b16 %v959, %v956
    %v984 = vpack.c.b16 %v960, %v957
    %1009 = vmatpush.bf16.msra.mxu0 %v982
    %1010 = vmatpush.bf16.msra.mxu0 %v979
    %1011 = vmatpush.bf16.msra.mxu0 %v976
    %1012 = vmatpush.bf16.msra.mxu0 %v973
    %1013 = vmatpush.bf16.msra.mxu0 %v970
    %1014 = vmatpush.bf16.msra.mxu0 %v967
    %1015 = vmatpush.bf16.msra.mxu0 %v964
    %1016 = vmatpush.bf16.msra.mxu0 %v961
    %1017 = vmatmul.bf16.gmra.mxu0 0
    %v1018 = vpop.f32.mrf.mxu0
    %v1019 = vadd.f32 0.0, %v1018
    %v1020 = vpop.f32.mrf.mxu0
    %1021 = vdwg.mxu0
    %1022 = vmatpush.bf16.msra.mxu0 %v983
    %1023 = vmatpush.bf16.msra.mxu0 %v980
    %1024 = vmatpush.bf16.msra.mxu0 %v977
    %1025 = vmatpush.bf16.msra.mxu0 %v974
    %1026 = vmatpush.bf16.msra.mxu0 %v971
    %1027 = vmatpush.bf16.msra.mxu0 %v968
    %1028 = vmatpush.bf16.msra.mxu0 %v965
    %1029 = vmatpush.bf16.msra.mxu0 %v962
    %1030 = vmatmul.bf16.gmra.mxu0 0
    %v1031 = vpop.f32.mrf.mxu0
    %v1032 = vadd.f32 0.0, %v1031
    %v1033 = vpop.f32.mrf.mxu0
    %1034 = vdwg.mxu0
    %1035 = vmatpush.bf16.msra.mxu0 %v984
    %1036 = vmatpush.bf16.msra.mxu0 %v981
    %1037 = vmatpush.bf16.msra.mxu0 %v978
    %1038 = vmatpush.bf16.msra.mxu0 %v975
    %1039 = vmatpush.bf16.msra.mxu0 %v972
    %1040 = vmatpush.bf16.msra.mxu0 %v969
    %1041 = vmatpush.bf16.msra.mxu0 %v966
    %1042 = vmatpush.bf16.msra.mxu0 %v963
    %1043 = vmatmul.bf16.gmra.mxu0 0
    %v1044 = vpop.f32.mrf.mxu0
    %v1045 = vadd.f32 0.0, %v1044
    %v1046 = vpop.f32.mrf.mxu0
    %1047 = vdwg.mxu0
    %v1048 = vadd.f32 %v878, %v1019
    %v1049 = vadd.f32 %v879, %v1032
    %v1050 = vxor.u32 %v1048, 2147483648
    %v1051 = vxor.u32 %v1049, 2147483648
    %v1052 = vmul.f32 %v1050, 1.442695
    %v1053 = vpow.pop %v1052
    %v1054 = vmul.f32 %v1051, 1.442695
    %v1055 = vpow.pop %v1054
    %v1056 = vadd.f32 %v1053, 1.0
    %v1057 = vadd.f32 %v1055, 1.0
    %v1058 = vrcp.pop %v1056
    %v1059 = vmul.f32 %v1056, %v1058
    %v1060 = vsub.f32 1.0, %v1059
    %v1061 = vmul.f32 %v1058, %v1060
    %v1062 = vadd.f32 %v1058, %v1061
    %vm1063 = vweird.f32 %v1056
    %vm1064 = vweird.f32 %v1058
    %vm1065 = vmor %vm1063, %vm1064
    %v1066 = vsel %vm1065, %v1058, %v1062
    %v1067 = vand.u32 2147483647, %v1056
    %vm1068 = vcmp.eq.f32.partialorder %v1067, 8.507059e+37
    %v1069 = vand.u32 %v1056, 2147483648
    %v1070 = vor.u32 1.1754944e-38, %v1069
    %v1071 = vsel %vm1068, %v1070, %v1066
    %v1072 = vmul.f32 1.0, %v1071
    %v1073 = vrcp.pop %v1057
    %v1074 = vmul.f32 %v1057, %v1073
    %v1075 = vsub.f32 1.0, %v1074
    %v1076 = vmul.f32 %v1073, %v1075
    %v1077 = vadd.f32 %v1073, %v1076
    %vm1078 = vweird.f32 %v1057
    %vm1079 = vweird.f32 %v1073
    %vm1080 = vmor %vm1078, %vm1079
    %v1081 = vsel %vm1080, %v1073, %v1077
    %v1082 = vand.u32 2147483647, %v1057
    %vm1083 = vcmp.eq.f32.partialorder %v1082, 8.507059e+37
    %v1084 = vand.u32 %v1057, 2147483648
    %v1085 = vor.u32 1.1754944e-38, %v1084
    %v1086 = vsel %vm1083, %v1085, %v1081
    %v1087 = vmul.f32 1.0, %v1086
    %v1088 = vadd.f32 %v1045, %v833
    %v1089 = vmul.f32 %v1072, %v1088
    %v1090 = vadd.f32 %v880, %v1089
    %v1091 = vtanh.pop %v1090
    %v1092 = vsub.f32 0.0, %v1091
    %v1093 = vmul.f32 %v1087, %v1092
    %v1094 = vadd.f32 %v1091, %v1093
    %v1095 = vsel %vm875, %v608, %v621
    %v1096 = vsel %vm876, %v695, %v708
    %v1097 = vsel %vm877, %v782, %v795
    %v1098 = vpack.c.bf16 %v1094, %v1094
    %1099 = vmatpush.bf16.msra.mxu0 %v982
    %1100 = vmatpush.bf16.msra.mxu0 %v979
    %1101 = vmatpush.bf16.msra.mxu0 %v976
    %1102 = vmatpush.bf16.msra.mxu0 %v973
    %1103 = vmatpush.bf16.msra.mxu0 %v970
    %1104 = vmatpush.bf16.msra.mxu0 %v967
    %1105 = vmatpush.bf16.msra.mxu0 %v964
    %1106 = vmatpush.bf16.msra.mxu0 %v961
    %1107 = vmatmul.bf16.gmra.mxu0 %v1098
    %v1108 = vpop.f32.mrf.mxu0
    %v1109 = vadd.f32 0.0, %v1108
    %v1110 = vpop.f32.mrf.mxu0
    %1111 = vdwg.mxu0
    %1112 = vmatpush.bf16.msra.mxu0 %v983
    %1113 = vmatpush.bf16.msra.mxu0 %v980
    %1114 = vmatpush.bf16.msra.mxu0 %v977
    %1115 = vmatpush.bf16.msra.mxu0 %v974
    %1116 = vmatpush.bf16.msra.mxu0 %v971
    %1117 = vmatpush.bf16.msra.mxu0 %v968
    %1118 = vmatpush.bf16.msra.mxu0 %v965
    %1119 = vmatpush.bf16.msra.mxu0 %v962
    %1120 = vmatmul.bf16.gmra.mxu0 %v1098
    %v1121 = vpop.f32.mrf.mxu0
    %v1122 = vadd.f32 0.0, %v1121
    %v1123 = vpop.f32.mrf.mxu0
    %1124 = vdwg.mxu0
    %1125 = vmatpush.bf16.msra.mxu0 %v984
    %1126 = vmatpush.bf16.msra.mxu0 %v981
    %1127 = vmatpush.bf16.msra.mxu0 %v978
    %1128 = vmatpush.bf16.msra.mxu0 %v975
    %1129 = vmatpush.bf16.msra.mxu0 %v972
    %1130 = vmatpush.bf16.msra.mxu0 %v969
    %1131 = vmatpush.bf16.msra.mxu0 %v966
    %1132 = vmatpush.bf16.msra.mxu0 %v963
    %1133 = vmatmul.bf16.gmra.mxu0 %v1098
    %v1134 = vpop.f32.mrf.mxu0
    %v1135 = vadd.f32 0.0, %v1134
    %v1136 = vpop.f32.mrf.mxu0
    %1137 = vdwg.mxu0
    %v1138 = vadd.f32 %v1095, %v1109
    %v1139 = vadd.f32 %v1096, %v1122
    %v1140 = vxor.u32 %v1138, 2147483648
    %v1141 = vxor.u32 %v1139, 2147483648
    %v1142 = vmul.f32 %v1140, 1.442695
    %v1143 = vpow.pop %v1142
    %v1144 = vmul.f32 %v1141, 1.442695
    %v1145 = vpow.pop %v1144
    %v1146 = vadd.f32 %v1143, 1.0
    %v1147 = vadd.f32 %v1145, 1.0
    %v1148 = vrcp.pop %v1146
    %v1149 = vmul.f32 %v1146, %v1148
    %v1150 = vsub.f32 1.0, %v1149
    %v1151 = vmul.f32 %v1148, %v1150
    %v1152 = vadd.f32 %v1148, %v1151
    %vm1153 = vweird.f32 %v1146
    %vm1154 = vweird.f32 %v1148
    %vm1155 = vmor %vm1153, %vm1154
    %v1156 = vsel %vm1155, %v1148, %v1152
    %v1157 = vand.u32 2147483647, %v1146
    %vm1158 = vcmp.eq.f32.partialorder %v1157, 8.507059e+37
    %v1159 = vand.u32 %v1146, 2147483648
    %v1160 = vor.u32 1.1754944e-38, %v1159
    %v1161 = vsel %vm1158, %v1160, %v1156
    %v1162 = vmul.f32 1.0, %v1161
    %v1163 = vrcp.pop %v1147
    %v1164 = vmul.f32 %v1147, %v1163
    %v1165 = vsub.f32 1.0, %v1164
    %v1166 = vmul.f32 %v1163, %v1165
    %v1167 = vadd.f32 %v1163, %v1166
    %vm1168 = vweird.f32 %v1147
    %vm1169 = vweird.f32 %v1163
    %vm1170 = vmor %vm1168, %vm1169
    %v1171 = vsel %vm1170, %v1163, %v1167
    %v1172 = vand.u32 2147483647, %v1147
    %vm1173 = vcmp.eq.f32.partialorder %v1172, 8.507059e+37
    %v1174 = vand.u32 %v1147, 2147483648
    %v1175 = vor.u32 1.1754944e-38, %v1174
    %v1176 = vsel %vm1173, %v1175, %v1171
    %v1177 = vmul.f32 1.0, %v1176
    %v1178 = vadd.f32 %v1135, %v833
    %v1179 = vmul.f32 %v1162, %v1178
    %v1180 = vadd.f32 %v1097, %v1179
    %v1181 = vtanh.pop %v1180
    %v1182 = vsub.f32 %v1094, %v1181
    %v1183 = vmul.f32 %v1177, %v1182
    %v1184 = vadd.f32 %v1181, %v1183
    %v1185 = vsel %vm875, %v611, %v618
    %v1186 = vsel %vm876, %v698, %v705
    %v1187 = vsel %vm877, %v785, %v792
    %v1188 = vpack.c.bf16 %v1184, %v1184
    %1189 = vmatpush.bf16.msra.mxu0 %v982
    %1190 = vmatpush.bf16.msra.mxu0 %v979
    %1191 = vmatpush.bf16.msra.mxu0 %v976
    %1192 = vmatpush.bf16.msra.mxu0 %v973
    %1193 = vmatpush.bf16.msra.mxu0 %v970
    %1194 = vmatpush.bf16.msra.mxu0 %v967
    %1195 = vmatpush.bf16.msra.mxu0 %v964
    %1196 = vmatpush.bf16.msra.mxu0 %v961
    %1197 = vmatmul.bf16.gmra.mxu0 %v1188
    %v1198 = vpop.f32.mrf.mxu0
    %v1199 = vadd.f32 0.0, %v1198
    %v1200 = vpop.f32.mrf.mxu0
    %1201 = vdwg.mxu0
    %1202 = vmatpush.bf16.msra.mxu0 %v983
    %1203 = vmatpush.bf16.msra.mxu0 %v980
    %1204 = vmatpush.bf16.msra.mxu0 %v977
    %1205 = vmatpush.bf16.msra.mxu0 %v974
    %1206 = vmatpush.bf16.msra.mxu0 %v971
    %1207 = vmatpush.bf16.msra.mxu0 %v968
    %1208 = vmatpush.bf16.msra.mxu0 %v965
    %1209 = vmatpush.bf16.msra.mxu0 %v962
    %1210 = vmatmul.bf16.gmra.mxu0 %v1188
    %v1211 = vpop.f32.mrf.mxu0
    %v1212 = vadd.f32 0.0, %v1211
    %v1213 = vpop.f32.mrf.mxu0
    %1214 = vdwg.mxu0
    %1215 = vmatpush.bf16.msra.mxu0 %v984
    %1216 = vmatpush.bf16.msra.mxu0 %v981
    %1217 = vmatpush.bf16.msra.mxu0 %v978
    %1218 = vmatpush.bf16.msra.mxu0 %v975
    %1219 = vmatpush.bf16.msra.mxu0 %v972
    %1220 = vmatpush.bf16.msra.mxu0 %v969
    %1221 = vmatpush.bf16.msra.mxu0 %v966
    %1222 = vmatpush.bf16.msra.mxu0 %v963
    %1223 = vmatmul.bf16.gmra.mxu0 %v1188
    %v1224 = vpop.f32.mrf.mxu0
    %v1225 = vadd.f32 0.0, %v1224
    %v1226 = vpop.f32.mrf.mxu0
    %1227 = vdwg.mxu0
    %v1228 = vadd.f32 %v1185, %v1199
    %v1229 = vadd.f32 %v1186, %v1212
    %v1230 = vxor.u32 %v1228, 2147483648
    %v1231 = vxor.u32 %v1229, 2147483648
    %v1232 = vmul.f32 %v1230, 1.442695
    %v1233 = vpow.pop %v1232
    %v1234 = vmul.f32 %v1231, 1.442695
    %v1235 = vpow.pop %v1234
    %v1236 = vadd.f32 %v1233, 1.0
    %v1237 = vadd.f32 %v1235, 1.0
    %v1238 = vrcp.pop %v1236
    %v1239 = vmul.f32 %v1236, %v1238
    %v1240 = vsub.f32 1.0, %v1239
    %v1241 = vmul.f32 %v1238, %v1240
    %v1242 = vadd.f32 %v1238, %v1241
    %vm1243 = vweird.f32 %v1236
    %vm1244 = vweird.f32 %v1238
    %vm1245 = vmor %vm1243, %vm1244
    %v1246 = vsel %vm1245, %v1238, %v1242
    %v1247 = vand.u32 2147483647, %v1236
    %vm1248 = vcmp.eq.f32.partialorder %v1247, 8.507059e+37
    %v1249 = vand.u32 %v1236, 2147483648
    %v1250 = vor.u32 1.1754944e-38, %v1249
    %v1251 = vsel %vm1248, %v1250, %v1246
    %v1252 = vmul.f32 1.0, %v1251
    %v1253 = vrcp.pop %v1237
    %v1254 = vmul.f32 %v1237, %v1253
    %v1255 = vsub.f32 1.0, %v1254
    %v1256 = vmul.f32 %v1253, %v1255
    %v1257 = vadd.f32 %v1253, %v1256
    %vm1258 = vweird.f32 %v1237
    %vm1259 = vweird.f32 %v1253
    %vm1260 = vmor %vm1258, %vm1259
    %v1261 = vsel %vm1260, %v1253, %v1257
    %v1262 = vand.u32 2147483647, %v1237
    %vm1263 = vcmp.eq.f32.partialorder %v1262, 8.507059e+37
    %v1264 = vand.u32 %v1237, 2147483648
    %v1265 = vor.u32 1.1754944e-38, %v1264
    %v1266 = vsel %vm1263, %v1265, %v1261
    %v1267 = vmul.f32 1.0, %v1266
    %v1268 = vadd.f32 %v1225, %v833
    %v1269 = vmul.f32 %v1252, %v1268
    %v1270 = vadd.f32 %v1187, %v1269
    %v1271 = vtanh.pop %v1270
    %v1272 = vsub.f32 %v1184, %v1271
    %v1273 = vmul.f32 %v1267, %v1272
    %v1274 = vadd.f32 %v1271, %v1273
    %v1275 = vsel %vm875, %v613, %v616
    %v1276 = vsel %vm876, %v700, %v703
    %v1277 = vsel %vm877, %v787, %v790
    %v1278 = vpack.c.bf16 %v1274, %v1274
    %1279 = vmatpush.bf16.msra.mxu0 %v982
    %1280 = vmatpush.bf16.msra.mxu0 %v979
    %1281 = vmatpush.bf16.msra.mxu0 %v976
    %1282 = vmatpush.bf16.msra.mxu0 %v973
    %1283 = vmatpush.bf16.msra.mxu0 %v970
    %1284 = vmatpush.bf16.msra.mxu0 %v967
    %1285 = vmatpush.bf16.msra.mxu0 %v964
    %1286 = vmatpush.bf16.msra.mxu0 %v961
    %1287 = vmatmul.bf16.gmra.mxu0 %v1278
    %v1288 = vpop.f32.mrf.mxu0
    %v1289 = vadd.f32 0.0, %v1288
    %v1290 = vpop.f32.mrf.mxu0
    %1291 = vdwg.mxu0
    %1292 = vmatpush.bf16.msra.mxu0 %v983
    %1293 = vmatpush.bf16.msra.mxu0 %v980
    %1294 = vmatpush.bf16.msra.mxu0 %v977
    %1295 = vmatpush.bf16.msra.mxu0 %v974
    %1296 = vmatpush.bf16.msra.mxu0 %v971
    %1297 = vmatpush.bf16.msra.mxu0 %v968
    %1298 = vmatpush.bf16.msra.mxu0 %v965
    %1299 = vmatpush.bf16.msra.mxu0 %v962
    %1300 = vmatmul.bf16.gmra.mxu0 %v1278
    %v1301 = vpop.f32.mrf.mxu0
    %v1302 = vadd.f32 0.0, %v1301
    %v1303 = vpop.f32.mrf.mxu0
    %1304 = vdwg.mxu0
    %1305 = vmatpush.bf16.msra.mxu0 %v984
    %1306 = vmatpush.bf16.msra.mxu0 %v981
    %1307 = vmatpush.bf16.msra.mxu0 %v978
    %1308 = vmatpush.bf16.msra.mxu0 %v975
    %1309 = vmatpush.bf16.msra.mxu0 %v972
    %1310 = vmatpush.bf16.msra.mxu0 %v969
    %1311 = vmatpush.bf16.msra.mxu0 %v966
    %1312 = vmatpush.bf16.msra.mxu0 %v963
    %1313 = vmatmul.bf16.gmra.mxu0 %v1278
    %v1314 = vpop.f32.mrf.mxu0
    %v1315 = vadd.f32 0.0, %v1314
    %v1316 = vpop.f32.mrf.mxu0
    %1317 = vdwg.mxu0
    %v1318 = vadd.f32 %v1275, %v1289
    %v1319 = vadd.f32 %v1276, %v1302
    %v1320 = vxor.u32 %v1318, 2147483648
    %v1321 = vxor.u32 %v1319, 2147483648
    %v1322 = vmul.f32 %v1320, 1.442695
    %v1323 = vpow.pop %v1322
    %v1324 = vmul.f32 %v1321, 1.442695
    %v1325 = vpow.pop %v1324
    %v1326 = vadd.f32 %v1323, 1.0
    %v1327 = vadd.f32 %v1325, 1.0
    %v1328 = vrcp.pop %v1326
    %v1329 = vmul.f32 %v1326, %v1328
    %v1330 = vsub.f32 1.0, %v1329
    %v1331 = vmul.f32 %v1328, %v1330
    %v1332 = vadd.f32 %v1328, %v1331
    %vm1333 = vweird.f32 %v1326
    %vm1334 = vweird.f32 %v1328
    %vm1335 = vmor %vm1333, %vm1334
    %v1336 = vsel %vm1335, %v1328, %v1332
    %v1337 = vand.u32 2147483647, %v1326
    %vm1338 = vcmp.eq.f32.partialorder %v1337, 8.507059e+37
    %v1339 = vand.u32 %v1326, 2147483648
    %v1340 = vor.u32 1.1754944e-38, %v1339
    %v1341 = vsel %vm1338, %v1340, %v1336
    %v1342 = vmul.f32 1.0, %v1341
    %v1343 = vrcp.pop %v1327
    %v1344 = vmul.f32 %v1327, %v1343
    %v1345 = vsub.f32 1.0, %v1344
    %v1346 = vmul.f32 %v1343, %v1345
    %v1347 = vadd.f32 %v1343, %v1346
    %vm1348 = vweird.f32 %v1327
    %vm1349 = vweird.f32 %v1343
    %vm1350 = vmor %vm1348, %vm1349
    %v1351 = vsel %vm1350, %v1343, %v1347
    %v1352 = vand.u32 2147483647, %v1327
    %vm1353 = vcmp.eq.f32.partialorder %v1352, 8.507059e+37
    %v1354 = vand.u32 %v1327, 2147483648
    %v1355 = vor.u32 1.1754944e-38, %v1354
    %v1356 = vsel %vm1353, %v1355, %v1351
    %v1357 = vmul.f32 1.0, %v1356
    %v1358 = vadd.f32 %v1315, %v833
    %v1359 = vmul.f32 %v1342, %v1358
    %v1360 = vadd.f32 %v1277, %v1359
    %v1361 = vtanh.pop %v1360
    %v1362 = vsub.f32 %v1274, %v1361
    %v1363 = vmul.f32 %v1357, %v1362
    %v1364 = vadd.f32 %v1361, %v1363
    %v1365 = vsel %vm875, %v616, %v613
    %v1366 = vsel %vm876, %v703, %v700
    %v1367 = vsel %vm877, %v790, %v787
    %v1368 = vpack.c.bf16 %v1364, %v1364
    %1369 = vmatpush.bf16.msra.mxu0 %v982
    %1370 = vmatpush.bf16.msra.mxu0 %v979
    %1371 = vmatpush.bf16.msra.mxu0 %v976
    %1372 = vmatpush.bf16.msra.mxu0 %v973
    %1373 = vmatpush.bf16.msra.mxu0 %v970
    %1374 = vmatpush.bf16.msra.mxu0 %v967
    %1375 = vmatpush.bf16.msra.mxu0 %v964
    %1376 = vmatpush.bf16.msra.mxu0 %v961
    %1377 = vmatmul.bf16.gmra.mxu0 %v1368
    %v1378 = vpop.f32.mrf.mxu0
    %v1379 = vadd.f32 0.0, %v1378
    %v1380 = vpop.f32.mrf.mxu0
    %1381 = vdwg.mxu0
    %1382 = vmatpush.bf16.msra.mxu0 %v983
    %1383 = vmatpush.bf16.msra.mxu0 %v980
    %1384 = vmatpush.bf16.msra.mxu0 %v977
    %1385 = vmatpush.bf16.msra.mxu0 %v974
    %1386 = vmatpush.bf16.msra.mxu0 %v971
    %1387 = vmatpush.bf16.msra.mxu0 %v968
    %1388 = vmatpush.bf16.msra.mxu0 %v965
    %1389 = vmatpush.bf16.msra.mxu0 %v962
    %1390 = vmatmul.bf16.gmra.mxu0 %v1368
    %v1391 = vpop.f32.mrf.mxu0
    %v1392 = vadd.f32 0.0, %v1391
    %v1393 = vpop.f32.mrf.mxu0
    %1394 = vdwg.mxu0
    %1395 = vmatpush.bf16.msra.mxu0 %v984
    %1396 = vmatpush.bf16.msra.mxu0 %v981
    %1397 = vmatpush.bf16.msra.mxu0 %v978
    %1398 = vmatpush.bf16.msra.mxu0 %v975
    %1399 = vmatpush.bf16.msra.mxu0 %v972
    %1400 = vmatpush.bf16.msra.mxu0 %v969
    %1401 = vmatpush.bf16.msra.mxu0 %v966
    %1402 = vmatpush.bf16.msra.mxu0 %v963
    %1403 = vmatmul.bf16.gmra.mxu0 %v1368
    %v1404 = vpop.f32.mrf.mxu0
    %v1405 = vadd.f32 0.0, %v1404
    %v1406 = vpop.f32.mrf.mxu0
    %1407 = vdwg.mxu0
    %v1408 = vadd.f32 %v1365, %v1379
    %v1409 = vadd.f32 %v1366, %v1392
    %v1410 = vxor.u32 %v1408, 2147483648
    %v1411 = vxor.u32 %v1409, 2147483648
    %v1412 = vmul.f32 %v1410, 1.442695
    %v1413 = vpow.pop %v1412
    %v1414 = vmul.f32 %v1411, 1.442695
    %v1415 = vpow.pop %v1414
    %v1416 = vadd.f32 %v1413, 1.0
    %v1417 = vadd.f32 %v1415, 1.0
    %v1418 = vrcp.pop %v1416
    %v1419 = vmul.f32 %v1416, %v1418
    %v1420 = vsub.f32 1.0, %v1419
    %v1421 = vmul.f32 %v1418, %v1420
    %v1422 = vadd.f32 %v1418, %v1421
    %vm1423 = vweird.f32 %v1416
    %vm1424 = vweird.f32 %v1418
    %vm1425 = vmor %vm1423, %vm1424
    %v1426 = vsel %vm1425, %v1418, %v1422
    %v1427 = vand.u32 2147483647, %v1416
    %vm1428 = vcmp.eq.f32.partialorder %v1427, 8.507059e+37
    %v1429 = vand.u32 %v1416, 2147483648
    %v1430 = vor.u32 1.1754944e-38, %v1429
    %v1431 = vsel %vm1428, %v1430, %v1426
    %v1432 = vmul.f32 1.0, %v1431
    %v1433 = vrcp.pop %v1417
    %v1434 = vmul.f32 %v1417, %v1433
    %v1435 = vsub.f32 1.0, %v1434
    %v1436 = vmul.f32 %v1433, %v1435
    %v1437 = vadd.f32 %v1433, %v1436
    %vm1438 = vweird.f32 %v1417
    %vm1439 = vweird.f32 %v1433
    %vm1440 = vmor %vm1438, %vm1439
    %v1441 = vsel %vm1440, %v1433, %v1437
    %v1442 = vand.u32 2147483647, %v1417
    %vm1443 = vcmp.eq.f32.partialorder %v1442, 8.507059e+37
    %v1444 = vand.u32 %v1417, 2147483648
    %v1445 = vor.u32 1.1754944e-38, %v1444
    %v1446 = vsel %vm1443, %v1445, %v1441
    %v1447 = vmul.f32 1.0, %v1446
    %v1448 = vadd.f32 %v1405, %v833
    %v1449 = vmul.f32 %v1432, %v1448
    %v1450 = vadd.f32 %v1367, %v1449
    %v1451 = vtanh.pop %v1450
    %v1452 = vsub.f32 %v1364, %v1451
    %v1453 = vmul.f32 %v1447, %v1452
    %v1454 = vadd.f32 %v1451, %v1453
    %v1455 = vsel %vm875, %v618, %v611
    %v1456 = vsel %vm876, %v705, %v698
    %v1457 = vsel %vm877, %v792, %v785
    %v1458 = vpack.c.bf16 %v1454, %v1454
    %1459 = vmatpush.bf16.msra.mxu0 %v982
    %1460 = vmatpush.bf16.msra.mxu0 %v979
    %1461 = vmatpush.bf16.msra.mxu0 %v976
    %1462 = vmatpush.bf16.msra.mxu0 %v973
    %1463 = vmatpush.bf16.msra.mxu0 %v970
    %1464 = vmatpush.bf16.msra.mxu0 %v967
    %1465 = vmatpush.bf16.msra.mxu0 %v964
    %1466 = vmatpush.bf16.msra.mxu0 %v961
    %1467 = vmatmul.bf16.gmra.mxu0 %v1458
    %v1468 = vpop.f32.mrf.mxu0
    %v1469 = vadd.f32 0.0, %v1468
    %v1470 = vpop.f32.mrf.mxu0
    %1471 = vdwg.mxu0
    %1472 = vmatpush.bf16.msra.mxu0 %v983
    %1473 = vmatpush.bf16.msra.mxu0 %v980
    %1474 = vmatpush.bf16.msra.mxu0 %v977
    %1475 = vmatpush.bf16.msra.mxu0 %v974
    %1476 = vmatpush.bf16.msra.mxu0 %v971
    %1477 = vmatpush.bf16.msra.mxu0 %v968
    %1478 = vmatpush.bf16.msra.mxu0 %v965
    %1479 = vmatpush.bf16.msra.mxu0 %v962
    %1480 = vmatmul.bf16.gmra.mxu0 %v1458
    %v1481 = vpop.f32.mrf.mxu0
    %v1482 = vadd.f32 0.0, %v1481
    %v1483 = vpop.f32.mrf.mxu0
    %1484 = vdwg.mxu0
    %1485 = vmatpush.bf16.msra.mxu0 %v984
    %1486 = vmatpush.bf16.msra.mxu0 %v981
    %1487 = vmatpush.bf16.msra.mxu0 %v978
    %1488 = vmatpush.bf16.msra.mxu0 %v975
    %1489 = vmatpush.bf16.msra.mxu0 %v972
    %1490 = vmatpush.bf16.msra.mxu0 %v969
    %1491 = vmatpush.bf16.msra.mxu0 %v966
    %1492 = vmatpush.bf16.msra.mxu0 %v963
    %1493 = vmatmul.bf16.gmra.mxu0 %v1458
    %v1494 = vpop.f32.mrf.mxu0
    %v1495 = vadd.f32 0.0, %v1494
    %v1496 = vpop.f32.mrf.mxu0
    %1497 = vdwg.mxu0
    %v1498 = vadd.f32 %v1455, %v1469
    %v1499 = vadd.f32 %v1456, %v1482
    %v1500 = vxor.u32 %v1498, 2147483648
    %v1501 = vxor.u32 %v1499, 2147483648
    %v1502 = vmul.f32 %v1500, 1.442695
    %v1503 = vpow.pop %v1502
    %v1504 = vmul.f32 %v1501, 1.442695
    %v1505 = vpow.pop %v1504
    %v1506 = vadd.f32 %v1503, 1.0
    %v1507 = vadd.f32 %v1505, 1.0
    %v1508 = vrcp.pop %v1506
    %v1509 = vmul.f32 %v1506, %v1508
    %v1510 = vsub.f32 1.0, %v1509
    %v1511 = vmul.f32 %v1508, %v1510
    %v1512 = vadd.f32 %v1508, %v1511
    %vm1513 = vweird.f32 %v1506
    %vm1514 = vweird.f32 %v1508
    %vm1515 = vmor %vm1513, %vm1514
    %v1516 = vsel %vm1515, %v1508, %v1512
    %v1517 = vand.u32 2147483647, %v1506
    %vm1518 = vcmp.eq.f32.partialorder %v1517, 8.507059e+37
    %v1519 = vand.u32 %v1506, 2147483648
    %v1520 = vor.u32 1.1754944e-38, %v1519
    %v1521 = vsel %vm1518, %v1520, %v1516
    %v1522 = vmul.f32 1.0, %v1521
    %v1523 = vrcp.pop %v1507
    %v1524 = vmul.f32 %v1507, %v1523
    %v1525 = vsub.f32 1.0, %v1524
    %v1526 = vmul.f32 %v1523, %v1525
    %v1527 = vadd.f32 %v1523, %v1526
    %vm1528 = vweird.f32 %v1507
    %vm1529 = vweird.f32 %v1523
    %vm1530 = vmor %vm1528, %vm1529
    %v1531 = vsel %vm1530, %v1523, %v1527
    %v1532 = vand.u32 2147483647, %v1507
    %vm1533 = vcmp.eq.f32.partialorder %v1532, 8.507059e+37
    %v1534 = vand.u32 %v1507, 2147483648
    %v1535 = vor.u32 1.1754944e-38, %v1534
    %v1536 = vsel %vm1533, %v1535, %v1531
    %v1537 = vmul.f32 1.0, %v1536
    %v1538 = vadd.f32 %v1495, %v833
    %v1539 = vmul.f32 %v1522, %v1538
    %v1540 = vadd.f32 %v1457, %v1539
    %v1541 = vtanh.pop %v1540
    %v1542 = vsub.f32 %v1454, %v1541
    %v1543 = vmul.f32 %v1537, %v1542
    %v1544 = vadd.f32 %v1541, %v1543
    %v1545 = vsel %vm875, %v621, %v608
    %v1546 = vsel %vm876, %v708, %v695
    %v1547 = vsel %vm877, %v795, %v782
    %v1548 = vpack.c.bf16 %v1544, %v1544
    %1549 = vmatpush.bf16.msra.mxu0 %v982
    %1550 = vmatpush.bf16.msra.mxu0 %v979
    %1551 = vmatpush.bf16.msra.mxu0 %v976
    %1552 = vmatpush.bf16.msra.mxu0 %v973
    %1553 = vmatpush.bf16.msra.mxu0 %v970
    %1554 = vmatpush.bf16.msra.mxu0 %v967
    %1555 = vmatpush.bf16.msra.mxu0 %v964
    %1556 = vmatpush.bf16.msra.mxu0 %v961
    %1557 = vmatmul.bf16.gmra.mxu0 %v1548
    %v1558 = vpop.f32.mrf.mxu0
    %v1559 = vadd.f32 0.0, %v1558
    %v1560 = vpop.f32.mrf.mxu0
    %1561 = vdwg.mxu0
    %1562 = vmatpush.bf16.msra.mxu0 %v983
    %1563 = vmatpush.bf16.msra.mxu0 %v980
    %1564 = vmatpush.bf16.msra.mxu0 %v977
    %1565 = vmatpush.bf16.msra.mxu0 %v974
    %1566 = vmatpush.bf16.msra.mxu0 %v971
    %1567 = vmatpush.bf16.msra.mxu0 %v968
    %1568 = vmatpush.bf16.msra.mxu0 %v965
    %1569 = vmatpush.bf16.msra.mxu0 %v962
    %1570 = vmatmul.bf16.gmra.mxu0 %v1548
    %v1571 = vpop.f32.mrf.mxu0
    %v1572 = vadd.f32 0.0, %v1571
    %v1573 = vpop.f32.mrf.mxu0
    %1574 = vdwg.mxu0
    %1575 = vmatpush.bf16.msra.mxu0 %v984
    %1576 = vmatpush.bf16.msra.mxu0 %v981
    %1577 = vmatpush.bf16.msra.mxu0 %v978
    %1578 = vmatpush.bf16.msra.mxu0 %v975
    %1579 = vmatpush.bf16.msra.mxu0 %v972
    %1580 = vmatpush.bf16.msra.mxu0 %v969
    %1581 = vmatpush.bf16.msra.mxu0 %v966
    %1582 = vmatpush.bf16.msra.mxu0 %v963
    %1583 = vmatmul.bf16.gmra.mxu0 %v1548
    %v1584 = vpop.f32.mrf.mxu0
    %v1585 = vadd.f32 0.0, %v1584
    %v1586 = vpop.f32.mrf.mxu0
    %1587 = vdwg.mxu0
    %v1588 = vadd.f32 %v1545, %v1559
    %v1589 = vadd.f32 %v1546, %v1572
    %v1590 = vxor.u32 %v1588, 2147483648
    %v1591 = vxor.u32 %v1589, 2147483648
    %v1592 = vmul.f32 %v1590, 1.442695
    %v1593 = vpow.pop %v1592
    %v1594 = vmul.f32 %v1591, 1.442695
    %v1595 = vpow.pop %v1594
    %v1596 = vadd.f32 %v1593, 1.0
    %v1597 = vadd.f32 %v1595, 1.0
    %v1598 = vrcp.pop %v1596
    %v1599 = vmul.f32 %v1596, %v1598
    %v1600 = vsub.f32 1.0, %v1599
    %v1601 = vmul.f32 %v1598, %v1600
    %v1602 = vadd.f32 %v1598, %v1601
    %vm1603 = vweird.f32 %v1596
    %vm1604 = vweird.f32 %v1598
    %vm1605 = vmor %vm1603, %vm1604
    %v1606 = vsel %vm1605, %v1598, %v1602
    %v1607 = vand.u32 2147483647, %v1596
    %vm1608 = vcmp.eq.f32.partialorder %v1607, 8.507059e+37
    %v1609 = vand.u32 %v1596, 2147483648
    %v1610 = vor.u32 1.1754944e-38, %v1609
    %v1611 = vsel %vm1608, %v1610, %v1606
    %v1612 = vmul.f32 1.0, %v1611
    %v1613 = vrcp.pop %v1597
    %v1614 = vmul.f32 %v1597, %v1613
    %v1615 = vsub.f32 1.0, %v1614
    %v1616 = vmul.f32 %v1613, %v1615
    %v1617 = vadd.f32 %v1613, %v1616
    %vm1618 = vweird.f32 %v1597
    %vm1619 = vweird.f32 %v1613
    %vm1620 = vmor %vm1618, %vm1619
    %v1621 = vsel %vm1620, %v1613, %v1617
    %v1622 = vand.u32 2147483647, %v1597
    %vm1623 = vcmp.eq.f32.partialorder %v1622, 8.507059e+37
    %v1624 = vand.u32 %v1597, 2147483648
    %v1625 = vor.u32 1.1754944e-38, %v1624
    %v1626 = vsel %vm1623, %v1625, %v1621
    %v1627 = vmul.f32 1.0, %v1626
    %v1628 = vadd.f32 %v1585, %v833
    %v1629 = vmul.f32 %v1612, %v1628
    %v1630 = vadd.f32 %v1547, %v1629
    %v1631 = vtanh.pop %v1630
    %v1632 = vsub.f32 %v1544, %v1631
    %v1633 = vmul.f32 %v1627, %v1632
    %v1634 = vadd.f32 %v1631, %v1633
    %v1635 = vsel %vm875, %v623, %v606
    %v1636 = vsel %vm876, %v710, %v693
    %v1637 = vsel %vm877, %v797, %v780
    %v1638 = vpack.c.bf16 %v1634, %v1634
    %1639 = vmatpush.bf16.msra.mxu0 %v982
    %1640 = vmatpush.bf16.msra.mxu0 %v979
    %1641 = vmatpush.bf16.msra.mxu0 %v976
    %1642 = vmatpush.bf16.msra.mxu0 %v973
    %1643 = vmatpush.bf16.msra.mxu0 %v970
    %1644 = vmatpush.bf16.msra.mxu0 %v967
    %1645 = vmatpush.bf16.msra.mxu0 %v964
    %1646 = vmatpush.bf16.msra.mxu0 %v961
    %1647 = vmatmul.bf16.gmra.mxu0 %v1638
    %v1648 = vpop.f32.mrf.mxu0
    %v1649 = vadd.f32 0.0, %v1648
    %v1650 = vpop.f32.mrf.mxu0
    %1651 = vdwg.mxu0
    %1652 = vmatpush.bf16.msra.mxu0 %v983
    %1653 = vmatpush.bf16.msra.mxu0 %v980
    %1654 = vmatpush.bf16.msra.mxu0 %v977
    %1655 = vmatpush.bf16.msra.mxu0 %v974
    %1656 = vmatpush.bf16.msra.mxu0 %v971
    %1657 = vmatpush.bf16.msra.mxu0 %v968
    %1658 = vmatpush.bf16.msra.mxu0 %v965
    %1659 = vmatpush.bf16.msra.mxu0 %v962
    %1660 = vmatmul.bf16.gmra.mxu0 %v1638
    %v1661 = vpop.f32.mrf.mxu0
    %v1662 = vadd.f32 0.0, %v1661
    %v1663 = vpop.f32.mrf.mxu0
    %1664 = vdwg.mxu0
    %1665 = vmatpush.bf16.msra.mxu0 %v984
    %1666 = vmatpush.bf16.msra.mxu0 %v981
    %1667 = vmatpush.bf16.msra.mxu0 %v978
    %1668 = vmatpush.bf16.msra.mxu0 %v975
    %1669 = vmatpush.bf16.msra.mxu0 %v972
    %1670 = vmatpush.bf16.msra.mxu0 %v969
    %1671 = vmatpush.bf16.msra.mxu0 %v966
    %1672 = vmatpush.bf16.msra.mxu0 %v963
    %1673 = vmatmul.bf16.gmra.mxu0 %v1638
    %v1674 = vpop.f32.mrf.mxu0
    %v1675 = vadd.f32 0.0, %v1674
    %v1676 = vpop.f32.mrf.mxu0
    %1677 = vdwg.mxu0
    %v1678 = vadd.f32 %v1635, %v1649
    %v1679 = vadd.f32 %v1636, %v1662
    %v1680 = vxor.u32 %v1678, 2147483648
    %v1681 = vxor.u32 %v1679, 2147483648
    %v1682 = vmul.f32 %v1680, 1.442695
    %v1683 = vpow.pop %v1682
    %v1684 = vmul.f32 %v1681, 1.442695
    %v1685 = vpow.pop %v1684
    %v1686 = vadd.f32 %v1683, 1.0
    %v1687 = vadd.f32 %v1685, 1.0
    %v1688 = vrcp.pop %v1686
    %v1689 = vmul.f32 %v1686, %v1688
    %v1690 = vsub.f32 1.0, %v1689
    %v1691 = vmul.f32 %v1688, %v1690
    %v1692 = vadd.f32 %v1688, %v1691
    %vm1693 = vweird.f32 %v1686
    %vm1694 = vweird.f32 %v1688
    %vm1695 = vmor %vm1693, %vm1694
    %v1696 = vsel %vm1695, %v1688, %v1692
    %v1697 = vand.u32 2147483647, %v1686
    %vm1698 = vcmp.eq.f32.partialorder %v1697, 8.507059e+37
    %v1699 = vand.u32 %v1686, 2147483648
    %v1700 = vor.u32 1.1754944e-38, %v1699
    %v1701 = vsel %vm1698, %v1700, %v1696
    %v1702 = vmul.f32 1.0, %v1701
    %v1703 = vrcp.pop %v1687
    %v1704 = vmul.f32 %v1687, %v1703
    %v1705 = vsub.f32 1.0, %v1704
    %v1706 = vmul.f32 %v1703, %v1705
    %v1707 = vadd.f32 %v1703, %v1706
    %vm1708 = vweird.f32 %v1687
    %vm1709 = vweird.f32 %v1703
    %vm1710 = vmor %vm1708, %vm1709
    %v1711 = vsel %vm1710, %v1703, %v1707
    %v1712 = vand.u32 2147483647, %v1687
    %vm1713 = vcmp.eq.f32.partialorder %v1712, 8.507059e+37
    %v1714 = vand.u32 %v1687, 2147483648
    %v1715 = vor.u32 1.1754944e-38, %v1714
    %v1716 = vsel %vm1713, %v1715, %v1711
    %v1717 = vmul.f32 1.0, %v1716
    %v1718 = vadd.f32 %v1675, %v833
    %v1719 = vmul.f32 %v1702, %v1718
    %v1720 = vadd.f32 %v1637, %v1719
    %v1721 = vtanh.pop %v1720
    %v1722 = vsub.f32 %v1634, %v1721
    %v1723 = vmul.f32 %v1717, %v1722
    %v1724 = vadd.f32 %v1721, %v1723
    %v1725 = vld [vmem:[%s5] sm:$0xff]
    %v1726 = vld [vmem:[%s5 + $0x8] sm:$0xff]
    %v1727 = vld [vmem:[%s5 + $0x10] sm:$0xff]
    %v1728 = vld [vmem:[%s5 + $0x18] sm:$0xff]
    %v1729 = vld [vmem:[%s5 + $0x20] sm:$0xff]
    %v1730 = vld [vmem:[%s5 + $0x28] sm:$0xff]
    %v1731 = vld [vmem:[%s5 + $0x30] sm:$0xff]
    %v1732 = vld [vmem:[%s5 + $0x38] sm:$0xff]
    %v1733 = vld [vmem:[%s5 + $0x40] sm:$0xff]
    %v1734 = vld [vmem:[%s5 + $0x48] sm:$0xff]
    %v1735 = vld [vmem:[%s5 + $0x50] sm:$0xff]
    %v1736 = vld [vmem:[%s5 + $0x58] sm:$0xff]
    %v1737 = vld [vmem:[%s5 + $0x60] sm:$0xff]
    %v1738 = vld [vmem:[%s5 + $0x68] sm:$0xff]
    %v1739 = vld [vmem:[%s5 + $0x70] sm:$0xff]
    %v1740 = vld [vmem:[%s5 + $0x78] sm:$0xff]
    %v1741 = vld [vmem:[%s6] sm:$0xff]
    %v1742 = vld [vmem:[%s6 + $0x8] sm:$0xff]
    %v1743 = vld [vmem:[%s6 + $0x10] sm:$0xff]
    %v1744 = vld [vmem:[%s6 + $0x18] sm:$0xff]
    %v1745 = vld [vmem:[%s6 + $0x20] sm:$0xff]
    %v1746 = vld [vmem:[%s6 + $0x28] sm:$0xff]
    %v1747 = vld [vmem:[%s6 + $0x30] sm:$0xff]
    %v1748 = vld [vmem:[%s6 + $0x38] sm:$0xff]
    %v1749 = vld [vmem:[%s6 + $0x40] sm:$0xff]
    %v1750 = vld [vmem:[%s6 + $0x48] sm:$0xff]
    %v1751 = vld [vmem:[%s6 + $0x50] sm:$0xff]
    %v1752 = vld [vmem:[%s6 + $0x58] sm:$0xff]
    %v1753 = vld [vmem:[%s6 + $0x60] sm:$0xff]
    %v1754 = vld [vmem:[%s6 + $0x68] sm:$0xff]
    %v1755 = vld [vmem:[%s6 + $0x70] sm:$0xff]
    %v1756 = vld [vmem:[%s6 + $0x78] sm:$0xff]
    %1757 = vmatpush.msra.mxu0 %v1756
    %1758 = vmatpush.msra.mxu0 %v1755
    %1759 = vmatpush.msra.mxu0 %v1754
    %1760 = vmatpush.msra.mxu0 %v1753
    %1761 = vmatpush.msra.mxu0 %v1752
    %1762 = vmatpush.msra.mxu0 %v1751
    %1763 = vmatpush.msra.mxu0 %v1750
    %1764 = vmatpush.msra.mxu0 %v1749
    %1765 = vmatpush.msra.mxu0 %v1748
    %1766 = vmatpush.msra.mxu0 %v1747
    %1767 = vmatpush.msra.mxu0 %v1746
    %1768 = vmatpush.msra.mxu0 %v1745
    %1769 = vmatpush.msra.mxu0 %v1744
    %1770 = vmatpush.msra.mxu0 %v1743
    %1771 = vmatpush.msra.mxu0 %v1742
    %1772 = vmatpush.msra.mxu0 %v1741
    %1773 = vmatmul.f32.gmra.mxu0 %v1724
    %v1774 = vpop.f32.mrf.mxu0
    %v1775 = vadd.f32 0.0, %v1774
    %1776 = vdwg.mxu0
    %1777 = vmatpush.msra.mxu0 %v1740
    %1778 = vmatpush.msra.mxu0 %v1739
    %1779 = vmatpush.msra.mxu0 %v1738
    %1780 = vmatpush.msra.mxu0 %v1737
    %1781 = vmatpush.msra.mxu0 %v1736
    %1782 = vmatpush.msra.mxu0 %v1735
    %1783 = vmatpush.msra.mxu0 %v1734
    %1784 = vmatpush.msra.mxu0 %v1733
    %1785 = vmatpush.msra.mxu0 %v1732
    %1786 = vmatpush.msra.mxu0 %v1731
    %1787 = vmatpush.msra.mxu0 %v1730
    %1788 = vmatpush.msra.mxu0 %v1729
    %1789 = vmatpush.msra.mxu0 %v1728
    %1790 = vmatpush.msra.mxu0 %v1727
    %1791 = vmatpush.msra.mxu0 %v1726
    %1792 = vmatpush.msra.mxu0 %v1725
    %1793 = vmatmul.f32.gmra.mxu0 %v1094
    %v1794 = vpop.f32.mrf.mxu0
    %v1795 = vadd.f32 %v1775, %v1794
    %1796 = vdwg.mxu0
    %v1797 = vld [vmem:[%s7] sm:$0x1]
    %v1799 = vperm.slane %v1797, 0
    %v1801 = vadd.f32 %v1795, %v1799
    %vm1802 = vcmp.ge.f32.partialorder %v1801, 0.0
    %v1803 = vmul.f32 %v1801, 0.01
    %v1804 = vsel %vm1802, %v1801, %v1803
    %v1805 = vld [vmem:[%s8] sm:$0xff]
    %v1806 = vld [vmem:[%s8 + $0x8] sm:$0xff]
    %v1807 = vld [vmem:[%s8 + $0x10] sm:$0xff]
    %v1808 = vld [vmem:[%s8 + $0x18] sm:$0xff]
    %v1809 = vld [vmem:[#allocation2] sm:$0x1]
    %v1811 = vperm.slane %v1809, 0
    %vm1813 = vcmask 261120
    %v1815 = vsel %vm1813, %v1804, 0
    %1817 = vmatpush.msra.mxu0 0.0
    %1818 = vmatpush.msra.mxu0 0.0
    %1819 = vmatpush.msra.mxu0 0.0
    %1820 = vmatpush.msra.mxu0 0.0
    %1821 = vmatpush.msra.mxu0 0.0
    %1822 = vmatpush.msra.mxu0 0.0
    %1823 = vmatpush.msra.mxu0 0.0
    %1824 = vmatpush.msra.mxu0 0.0
    %1825 = vmatpush.msra.mxu0 0.0
    %1826 = vmatpush.msra.mxu0 0.0
    %1827 = vmatpush.msra.mxu0 0.0
    %1828 = vmatpush.msra.mxu0 0.0
    %1829 = vmatpush.msra.mxu0 %v1808
    %1830 = vmatpush.msra.mxu0 %v1807
    %1831 = vmatpush.msra.mxu0 %v1806
    %1832 = vmatpush.msra.mxu0 %v1805
    %1833 = vmatmul.f32.gmra.mxu0 %v1815
    %v1834 = vpop.f32.mrf.mxu0
    %v1835 = vadd.f32 %v1811, %v1834
    %1836 = vdwg.mxu0
    %vm1837 = vcmask 7168
    %1838 = vst.msk [vmem:[%s10] sm:$0xff] %vm1837, %v1835
    // Predicated region
    $region46: #{tpu_custom_call.1} parent=1 // pred_check
      _
    $region47: #{tpu_custom_call.1} parent=1 // pred_check_branch
      %1840 = sbr.rel (0) target = $region49
    $region48: #{tpu_custom_call.1} parent=1 // pred_region
      _
    $region49: #{tpu_custom_call.1} parent=1 // pred_fallthru
      _
    // Predicated region
    $region50: #{tpu_custom_call.1} parent=1 // pred_check
      _
    $region51: #{tpu_custom_call.1} parent=1 // pred_check_branch
      %1842 = sbr.rel (0) target = $region53
    $region52: #{tpu_custom_call.1} parent=1 // pred_region
      _
    $region53: #{tpu_custom_call.1} parent=1 // pred_fallthru
      _
    %1843 = vsyncpa [#allocation4], 1

</llo_original>
